<compile_context>
chip_gen: v6e
topology: v6e:2x2x1
jax: 0.10.0
libtpu: 0.0.40
codegen_flags: <defaults>
</compile_context>

<pallas_src>
import functools

import jax
import jax.numpy as jnp
import numpy as np
from jax.experimental import pallas as pl
from jax.experimental.pallas import tpu as pltpu

_LANES = 128
_GEMM_DTYPE = jnp.bfloat16      # MXU input dtype (accumulation is f32)


def _round_up(x, m):
    return (x + m - 1) // m * m


def _conv_image(xv, wv, tap_offsets, lout):
    """Transposed-conv output (Cout, LOUT) f32 for one flat, dilated+padded
    image xv: (Cin, LIN) bf16, with per-tap weights wv: (kH*kW, Cout, Cin)."""
    acc = None
    for t, off in enumerate(tap_offsets):
        p = jnp.dot(wv[t], xv[:, off:off + lout],
                    preferred_element_type=jnp.float32)      # MXU, f32 acc
        acc = p if acc is None else acc + p
    return acc


# ---------------------------------------------------------------------------
# Pass 1: per-image-tile per-channel sum / sum-of-squares (no conv writeback).
# ---------------------------------------------------------------------------
def _stats_kernel(x_ref, w_ref, mask_ref, sum_ref, ssq_ref, *,
                  tap_offsets, lout, b_tile):
    # x_ref:    (B, Cin, LIN)   bf16 zero-dilated+padded activation, flat/image
    # w_ref:    (kHW, Cout, Cin) bf16 per-tap flipped ConvTranspose2d weights
    # mask_ref: (1, LOUT)        f32, 1.0 on the Hout*Wout valid flat positions
    # sum_ref / ssq_ref: (1, Cout, 1) per-tile per-channel sums
    wv = w_ref[...]
    m = mask_ref[...]
    s = None
    q = None
    for b in range(b_tile):                       # static unrolled image loop
        acc = _conv_image(x_ref[b], wv, tap_offsets, lout)   # (Cout, LOUT)
        am = acc * m
        sb = jnp.sum(am, axis=1, keepdims=True)
        qb = jnp.sum(am * acc, axis=1, keepdims=True)
        s = sb if s is None else s + sb
        q = qb if q is None else q + qb
    sum_ref[0] = s
    ssq_ref[0] = q


# ---------------------------------------------------------------------------
# Pass 2: recompute conv from bf16 activation, fused BN affine + LeakyReLU.
# ---------------------------------------------------------------------------
def _bn_act_kernel(x_ref, w_ref, scale_ref, shift_ref, out_ref, *,
                   tap_offsets, lout, b_tile, slope):
    wv = w_ref[...]
    scale = scale_ref[...]                         # (Cout, 1)
    shift = shift_ref[...]                         # (Cout, 1)
    for b in range(b_tile):
        acc = _conv_image(x_ref[b], wv, tap_offsets, lout)   # (Cout, LOUT)
        y = acc * scale + shift
        out_ref[b] = jnp.where(y >= 0.0, y, slope * y)        # lane-dense store


# ---------------------------------------------------------------------------
# Wrapper: layout prep (dilation/pad/flatten, per-tap weights) + two pallas_calls.
# ---------------------------------------------------------------------------
def deconv_block_forward(x, weight, bias, gamma, beta, *,
                         stride=2, padding=1, act_slope=0.1, eps=1e-5):
    """x: (N, Cin, H, W) float32; weight: (Cin, Cout, kH, kW) (PyTorch
    ConvTranspose2d layout); bias/gamma/beta: (Cout,).
    NOTE: the conv `bias` cancels exactly under train-mode BatchNorm, so it is
    intentionally not applied inside the kernels (semantics are unchanged)."""
    del bias  # cancelled exactly by train-mode BN (mean subtraction)

    N, Cin, H, W = x.shape
    Cin_w, Cout, kH, kW = weight.shape
    assert Cin_w == Cin
    pad = kH - 1 - padding
    assert pad >= 0, "padding > kernel_size - 1 not supported"

    Hout = (H - 1) * stride - 2 * padding + (kH - 1) + 1
    Wout = (W - 1) * stride - 2 * padding + (kW - 1) + 1
    Hd, Wd = (H - 1) * stride + 1, (W - 1) * stride + 1
    Hp, Wp = Hd + 2 * pad, Wd + 2 * pad            # zero-dilated + padded

    LOUT = _round_up(Hp * Wp, _LANES)              # flat output grid (lanes)
    max_off = (kH - 1) * Wp + (kW - 1)
    LIN = _round_up(LOUT + max_off, _LANES)

    # ---- per-step image tile: largest divisor of N that fits a conservative
    # VMEM budget AND keeps the grid length >= 2 (both TensorCores on v7x). ---
    per_img = 2 * Cin * LIN * 2 + 2 * Cout * LOUT * 4 + 2 * Cout * LOUT * 4
    vmem_budget = 24 * 1024 * 1024                 # safe on v5e/v6e/v7x
    b_cap = max(1, vmem_budget // max(per_img, 1))
    b_tile = 1
    for b in range(1, N + 1):
        if N % b == 0 and b <= b_cap and (N // b) >= min(2, N):
            b_tile = b
    n_steps = N // b_tile

    # Zero-dilated, zero-padded activation, flattened per image (bf16).
    x_dp = jnp.zeros((N, Cin, Hp, Wp), x.dtype)
    x_dp = x_dp.at[:, :, pad:pad + Hd:stride, pad:pad + Wd:stride].set(x)
    x_flat = jnp.zeros((N, Cin, LIN), _GEMM_DTYPE)
    x_flat = x_flat.at[:, :, :Hp * Wp].set(
        x_dp.reshape(N, Cin, Hp * Wp).astype(_GEMM_DTYPE))
    # TODO(synk): for large H,W switch to the stride-2 sub-pixel decomposition
    # (4 phase convs on the undilated input) to avoid the 4x zero-dilation.

    # Per-tap (Cout, Cin) weight matrices (spatially flipped), bf16.
    wf = weight[:, :, ::-1, ::-1]                              # (Cin,Cout,kH,kW)
    w_taps = jnp.transpose(wf, (2, 3, 1, 0)).reshape(
        kH * kW, Cout, Cin).astype(_GEMM_DTYPE)

    # Static mask of valid flat positions (row < Hout, col < Wout).
    p = np.arange(LOUT)
    valid = (p < Hp * Wp) & (p % Wp < Wout) & (p // Wp < Hout)
    mask = jnp.asarray(valid.astype(np.float32)).reshape(1, LOUT)

    tap_offsets = tuple(kh * Wp + kw for kh in range(kH) for kw in range(kW))

    cparams = pltpu.CompilerParams(
        dimension_semantics=("parallel",),          # image tiles independent
        vmem_limit_bytes=32 * 1024 * 1024)

    # ---- pass 1: per-tile channel statistics only (no conv HBM writeback) ----
    k1 = functools.partial(_stats_kernel, tap_offsets=tap_offsets,
                           lout=LOUT, b_tile=b_tile)
    ch_sum, ch_ssq = pl.pallas_call(
        k1,
        out_shape=(jax.ShapeDtypeStruct((n_steps, Cout, 1), jnp.float32),
                   jax.ShapeDtypeStruct((n_steps, Cout, 1), jnp.float32)),
        grid=(n_steps,),
        in_specs=[
            pl.BlockSpec((b_tile, Cin, LIN), lambda n: (n, 0, 0)),
            pl.BlockSpec((kH * kW, Cout, Cin), lambda n: (0, 0, 0)),
            pl.BlockSpec((1, LOUT), lambda n: (0, 0)),
        ],
        out_specs=(
            pl.BlockSpec((1, Cout, 1), lambda n: (n, 0, 0)),
            pl.BlockSpec((1, Cout, 1), lambda n: (n, 0, 0)),
        ),
        compiler_params=cparams,
    )(x_flat, w_taps, mask)

    # Global train-mode BN statistics -> fused per-channel scale/shift.
    cnt = float(N * Hout * Wout)
    tot = jnp.sum(ch_sum[:, :, 0], axis=0)
    tot2 = jnp.sum(ch_ssq[:, :, 0], axis=0)
    mean = tot / cnt
    var = jnp.maximum(tot2 / cnt - mean * mean, 0.0)
    scale = gamma.astype(jnp.float32) * jax.lax.rsqrt(var + eps)
    shift = beta.astype(jnp.float32) - mean * scale

    # ---- pass 2: recompute conv (bf16 GEMM) + BN affine + LeakyReLU ----
    k2 = functools.partial(_bn_act_kernel, tap_offsets=tap_offsets,
                           lout=LOUT, b_tile=b_tile, slope=act_slope)
    out_flat = pl.pallas_call(
        k2,
        out_shape=jax.ShapeDtypeStruct((N, Cout, LOUT), jnp.float32),
        grid=(n_steps,),
        in_specs=[
            pl.BlockSpec((b_tile, Cin, LIN), lambda n: (n, 0, 0)),
            pl.BlockSpec((kH * kW, Cout, Cin), lambda n: (0, 0, 0)),
            pl.BlockSpec((Cout, 1), lambda n: (0, 0)),
            pl.BlockSpec((Cout, 1), lambda n: (0, 0)),
        ],
        out_specs=pl.BlockSpec((b_tile, Cout, LOUT), lambda n: (n, 0, 0)),
        compiler_params=cparams,
    )(x_flat, w_taps, scale.reshape(Cout, 1), shift.reshape(Cout, 1))

    # Already in NCHW channel order; drop lane padding + invalid grid rows/cols.
    y = out_flat[:, :, :Hp * Wp].reshape(N, Cout, Hp, Wp)[:, :, :Hout, :Wout]
    return y


# ---------------------------------------------------------------------------
# Pure-JAX reference (matches PyTorch semantics, incl. the conv bias) for
# validation -- confirms the in-kernel bias elision is exact under train BN.
# ---------------------------------------------------------------------------
def reference_forward(x, weight, bias, gamma, beta, *,
                      stride=2, padding=1, act_slope=0.1, eps=1e-5):
    Cin, Cout, kH, kW = weight.shape
    w_oihw = jnp.transpose(weight[:, :, ::-1, ::-1], (1, 0, 2, 3))
    pad = (kH - 1) - padding
    y = jax.lax.conv_general_dilated(
        x, w_oihw, window_strides=(1, 1),
        padding=((pad, pad), (pad, pad)),
        lhs_dilation=(stride, stride),
        dimension_numbers=("NCHW", "OIHW", "NCHW"),
        precision=jax.lax.Precision.HIGHEST)
    y = y + bias.reshape(1, -1, 1, 1)
    mean = y.mean(axis=(0, 2, 3), keepdims=True)
    var = ((y - mean) ** 2).mean(axis=(0, 2, 3), keepdims=True)
    y = gamma.reshape(1, -1, 1, 1) * (y - mean) / jnp.sqrt(var + eps) \
        + beta.reshape(1, -1, 1, 1)
    return jnp.where(y >= 0.0, y, act_slope * y)


if __name__ == "__main__":
    # Small shapes consistent with the module: batch=2, in_channels=4,
    # out_channels=8, spatial=16x16.
    N, Cin, Cout, H, W = 2, 4, 8, 16, 16
    kH = kW = 3

    key = jax.random.PRNGKey(0)
    kx, kw, kb = jax.random.split(key, 3)

    x = jax.random.normal(kx, (N, Cin, H, W), dtype=jnp.float32)

    # Deterministic kaiming_normal-style init (fan_in mode, leaky_relu gain).
    fan_in = Cout * kH * kW  # PyTorch fan_in for ConvTranspose2d weight layout
    std = float(np.sqrt(2.0) / np.sqrt(fan_in))
    weight = std * jax.random.normal(kw, (Cin, Cout, kH, kW), dtype=jnp.float32)
    bound = 1.0 / float(np.sqrt(fan_in))
    bias = jax.random.uniform(kb, (Cout,), minval=-bound, maxval=bound,
                              dtype=jnp.float32)
    gamma = jnp.ones((Cout,), jnp.float32)   # BatchNorm2d affine defaults
    beta = jnp.zeros((Cout,), jnp.float32)

    # TODO(synk): MaxUnpool2d branch is dead code in the module (self.maxunpool
    # is hard-set to False), so it is intentionally not implemented.

    out = jax.block_until_ready(
        deconv_block_forward(x, weight, bias, gamma, beta))
    ref = jax.block_until_ready(
        reference_forward(x, weight, bias, gamma, beta))

    assert out.shape == (N, Cout, 2 * H - 1, 2 * W - 1), out.shape
    # bf16 MXU inputs (f32 accumulation) => ~1e-3 relative error vs the f32
    # HIGHEST-precision reference; 2e-2 keeps a comfortable margin.
    np.testing.assert_allclose(np.asarray(out), np.asarray(ref),
                               rtol=2e-2, atol=2e-2)
    print("KERNEL_OK")
</pallas_src>

<mosaic_0001>
module attributes {stable_mosaic.version = 11 : i64} {
  func.func @_stats_kernel(%arg0: i32, %arg1: memref<1x4x1280xbf16, #tpu.memory_space<vmem>>, %arg2: memref<9x8x4xbf16, #tpu.memory_space<vmem>>, %arg3: memref<1x1152xf32, #tpu.memory_space<vmem>>, %arg4: memref<1x8x1xf32, #tpu.memory_space<vmem>>, %arg5: memref<1x8x1xf32, #tpu.memory_space<vmem>>) attributes {dimension_semantics = [#tpu.dimension_semantics<parallel>], iteration_bounds = array<i64: 2>, scalar_prefetch = 0 : i64, scratch_operands = 0 : i64, tpu.core_type = #tpu.core_type<tc>, window_params = [{transform_indices = @transform_0, window_bounds = array<i64: 1, 4, 1280>}, {pipeline_mode = #tpu.pipeline_mode<synchronous>, transform_indices = @transform_1, window_bounds = array<i64: 9, 8, 4>}, {pipeline_mode = #tpu.pipeline_mode<synchronous>, transform_indices = @transform_2, window_bounds = array<i64: 1, 1152>}, {transform_indices = @transform_3, window_bounds = array<i64: 1, 8, 1>}, {transform_indices = @transform_4, window_bounds = array<i64: 1, 8, 1>}]} {
    %c0 = arith.constant 0 : index
    %c0_0 = arith.constant 0 : index
    %c0_1 = arith.constant 0 : index
    %0 = vector.load %arg2[%c0, %c0_0, %c0_1] : memref<9x8x4xbf16, #tpu.memory_space<vmem>>, vector<9x8x4xbf16>
    %c0_2 = arith.constant 0 : index
    %c0_3 = arith.constant 0 : index
    %1 = vector.load %arg3[%c0_2, %c0_3] : memref<1x1152xf32, #tpu.memory_space<vmem>>, vector<1x1152xf32>
    %c0_4 = arith.constant 0 : index
    %c0_5 = arith.constant 0 : index
    %c0_6 = arith.constant 0 : index
    %2 = vector.load %arg1[%c0_4, %c0_5, %c0_6] : memref<1x4x1280xbf16, #tpu.memory_space<vmem>>, vector<1x4x1280xbf16>
    %3 = vector.shape_cast %2 : vector<1x4x1280xbf16> to vector<4x1280xbf16>
    %4 = vector.extract_strided_slice %0 {offsets = [0, 0, 0], sizes = [1, 8, 4], strides = [1, 1, 1]} : vector<9x8x4xbf16> to vector<1x8x4xbf16>
    %5 = vector.shape_cast %4 : vector<1x8x4xbf16> to vector<8x4xbf16>
    %6 = vector.extract_strided_slice %3 {offsets = [0, 0], sizes = [4, 1152], strides = [1, 1]} : vector<4x1280xbf16> to vector<4x1152xbf16>
    %cst = arith.constant dense<0.000000e+00> : vector<8x1152xf32>
    %7 = tpu.matmul %5, %6, %cst {dimension_numbers = #tpu.dot_dimension_numbers<[1], [0], [0], [1], [0, 0, 1, 1], [], []>} : vector<8x4xbf16>, vector<4x1152xbf16>, vector<8x1152xf32> -> vector<8x1152xf32>
    %8 = vector.extract_strided_slice %0 {offsets = [1, 0, 0], sizes = [1, 8, 4], strides = [1, 1, 1]} : vector<9x8x4xbf16> to vector<1x8x4xbf16>
    %9 = vector.shape_cast %8 : vector<1x8x4xbf16> to vector<8x4xbf16>
    %10 = vector.extract_strided_slice %3 {offsets = [0, 1], sizes = [4, 1152], strides = [1, 1]} : vector<4x1280xbf16> to vector<4x1152xbf16>
    %cst_7 = arith.constant dense<0.000000e+00> : vector<8x1152xf32>
    %11 = tpu.matmul %9, %10, %cst_7 {dimension_numbers = #tpu.dot_dimension_numbers<[1], [0], [0], [1], [0, 0, 1, 1], [], []>} : vector<8x4xbf16>, vector<4x1152xbf16>, vector<8x1152xf32> -> vector<8x1152xf32>
    %12 = arith.addf %7, %11 : vector<8x1152xf32>
    %13 = vector.extract_strided_slice %0 {offsets = [2, 0, 0], sizes = [1, 8, 4], strides = [1, 1, 1]} : vector<9x8x4xbf16> to vector<1x8x4xbf16>
    %14 = vector.shape_cast %13 : vector<1x8x4xbf16> to vector<8x4xbf16>
    %15 = vector.extract_strided_slice %3 {offsets = [0, 2], sizes = [4, 1152], strides = [1, 1]} : vector<4x1280xbf16> to vector<4x1152xbf16>
    %cst_8 = arith.constant dense<0.000000e+00> : vector<8x1152xf32>
    %16 = tpu.matmul %14, %15, %cst_8 {dimension_numbers = #tpu.dot_dimension_numbers<[1], [0], [0], [1], [0, 0, 1, 1], [], []>} : vector<8x4xbf16>, vector<4x1152xbf16>, vector<8x1152xf32> -> vector<8x1152xf32>
    %17 = arith.addf %12, %16 : vector<8x1152xf32>
    %18 = vector.extract_strided_slice %0 {offsets = [3, 0, 0], sizes = [1, 8, 4], strides = [1, 1, 1]} : vector<9x8x4xbf16> to vector<1x8x4xbf16>
    %19 = vector.shape_cast %18 : vector<1x8x4xbf16> to vector<8x4xbf16>
    %20 = vector.extract_strided_slice %3 {offsets = [0, 33], sizes = [4, 1152], strides = [1, 1]} : vector<4x1280xbf16> to vector<4x1152xbf16>
    %cst_9 = arith.constant dense<0.000000e+00> : vector<8x1152xf32>
    %21 = tpu.matmul %19, %20, %cst_9 {dimension_numbers = #tpu.dot_dimension_numbers<[1], [0], [0], [1], [0, 0, 1, 1], [], []>} : vector<8x4xbf16>, vector<4x1152xbf16>, vector<8x1152xf32> -> vector<8x1152xf32>
    %22 = arith.addf %17, %21 : vector<8x1152xf32>
    %23 = vector.extract_strided_slice %0 {offsets = [4, 0, 0], sizes = [1, 8, 4], strides = [1, 1, 1]} : vector<9x8x4xbf16> to vector<1x8x4xbf16>
    %24 = vector.shape_cast %23 : vector<1x8x4xbf16> to vector<8x4xbf16>
    %25 = vector.extract_strided_slice %3 {offsets = [0, 34], sizes = [4, 1152], strides = [1, 1]} : vector<4x1280xbf16> to vector<4x1152xbf16>
    %cst_10 = arith.constant dense<0.000000e+00> : vector<8x1152xf32>
    %26 = tpu.matmul %24, %25, %cst_10 {dimension_numbers = #tpu.dot_dimension_numbers<[1], [0], [0], [1], [0, 0, 1, 1], [], []>} : vector<8x4xbf16>, vector<4x1152xbf16>, vector<8x1152xf32> -> vector<8x1152xf32>
    %27 = arith.addf %22, %26 : vector<8x1152xf32>
    %28 = vector.extract_strided_slice %0 {offsets = [5, 0, 0], sizes = [1, 8, 4], strides = [1, 1, 1]} : vector<9x8x4xbf16> to vector<1x8x4xbf16>
    %29 = vector.shape_cast %28 : vector<1x8x4xbf16> to vector<8x4xbf16>
    %30 = vector.extract_strided_slice %3 {offsets = [0, 35], sizes = [4, 1152], strides = [1, 1]} : vector<4x1280xbf16> to vector<4x1152xbf16>
    %cst_11 = arith.constant dense<0.000000e+00> : vector<8x1152xf32>
    %31 = tpu.matmul %29, %30, %cst_11 {dimension_numbers = #tpu.dot_dimension_numbers<[1], [0], [0], [1], [0, 0, 1, 1], [], []>} : vector<8x4xbf16>, vector<4x1152xbf16>, vector<8x1152xf32> -> vector<8x1152xf32>
    %32 = arith.addf %27, %31 : vector<8x1152xf32>
    %33 = vector.extract_strided_slice %0 {offsets = [6, 0, 0], sizes = [1, 8, 4], strides = [1, 1, 1]} : vector<9x8x4xbf16> to vector<1x8x4xbf16>
    %34 = vector.shape_cast %33 : vector<1x8x4xbf16> to vector<8x4xbf16>
    %35 = vector.extract_strided_slice %3 {offsets = [0, 66], sizes = [4, 1152], strides = [1, 1]} : vector<4x1280xbf16> to vector<4x1152xbf16>
    %cst_12 = arith.constant dense<0.000000e+00> : vector<8x1152xf32>
    %36 = tpu.matmul %34, %35, %cst_12 {dimension_numbers = #tpu.dot_dimension_numbers<[1], [0], [0], [1], [0, 0, 1, 1], [], []>} : vector<8x4xbf16>, vector<4x1152xbf16>, vector<8x1152xf32> -> vector<8x1152xf32>
    %37 = arith.addf %32, %36 : vector<8x1152xf32>
    %38 = vector.extract_strided_slice %0 {offsets = [7, 0, 0], sizes = [1, 8, 4], strides = [1, 1, 1]} : vector<9x8x4xbf16> to vector<1x8x4xbf16>
    %39 = vector.shape_cast %38 : vector<1x8x4xbf16> to vector<8x4xbf16>
    %40 = vector.extract_strided_slice %3 {offsets = [0, 67], sizes = [4, 1152], strides = [1, 1]} : vector<4x1280xbf16> to vector<4x1152xbf16>
    %cst_13 = arith.constant dense<0.000000e+00> : vector<8x1152xf32>
    %41 = tpu.matmul %39, %40, %cst_13 {dimension_numbers = #tpu.dot_dimension_numbers<[1], [0], [0], [1], [0, 0, 1, 1], [], []>} : vector<8x4xbf16>, vector<4x1152xbf16>, vector<8x1152xf32> -> vector<8x1152xf32>
    %42 = arith.addf %37, %41 : vector<8x1152xf32>
    %43 = vector.extract_strided_slice %0 {offsets = [8, 0, 0], sizes = [1, 8, 4], strides = [1, 1, 1]} : vector<9x8x4xbf16> to vector<1x8x4xbf16>
    %44 = vector.shape_cast %43 : vector<1x8x4xbf16> to vector<8x4xbf16>
    %45 = vector.extract_strided_slice %3 {offsets = [0, 68], sizes = [4, 1152], strides = [1, 1]} : vector<4x1280xbf16> to vector<4x1152xbf16>
    %cst_14 = arith.constant dense<0.000000e+00> : vector<8x1152xf32>
    %46 = tpu.matmul %44, %45, %cst_14 {dimension_numbers = #tpu.dot_dimension_numbers<[1], [0], [0], [1], [0, 0, 1, 1], [], []>} : vector<8x4xbf16>, vector<4x1152xbf16>, vector<8x1152xf32> -> vector<8x1152xf32>
    %47 = arith.addf %42, %46 : vector<8x1152xf32>
    %48 = vector.broadcast %1 : vector<1x1152xf32> to vector<8x1152xf32>
    %49 = arith.mulf %47, %48 : vector<8x1152xf32>
    %cst_15 = arith.constant dense<0.000000e+00> : vector<8xf32>
    %50 = vector.multi_reduction <add>, %49, %cst_15 [1] : vector<8x1152xf32> to vector<8xf32>
    %51 = vector.shape_cast %50 : vector<8xf32> to vector<8x1xf32>
    %52 = arith.mulf %49, %47 : vector<8x1152xf32>
    %cst_16 = arith.constant dense<0.000000e+00> : vector<8xf32>
    %53 = vector.multi_reduction <add>, %52, %cst_16 [1] : vector<8x1152xf32> to vector<8xf32>
    %54 = vector.shape_cast %53 : vector<8xf32> to vector<8x1xf32>
    %c0_17 = arith.constant 0 : index
    %c0_18 = arith.constant 0 : index
    %c0_19 = arith.constant 0 : index
    %55 = vector.load %arg4[%c0_17, %c0_18, %c0_19] : memref<1x8x1xf32, #tpu.memory_space<vmem>>, vector<1x8x1xf32>
    %56 = vector.shape_cast %55 : vector<1x8x1xf32> to vector<8x1xf32>
    %57 = vector.shape_cast %51 : vector<8x1xf32> to vector<1x8x1xf32>
    tpu.vector_store %arg4[%c0_17, %c0_18, %c0_19], %57 {strides = array<i32>} : memref<1x8x1xf32, #tpu.memory_space<vmem>>, vector<1x8x1xf32>,
    %c0_20 = arith.constant 0 : index
    %c0_21 = arith.constant 0 : index
    %c0_22 = arith.constant 0 : index
    %58 = vector.load %arg5[%c0_20, %c0_21, %c0_22] : memref<1x8x1xf32, #tpu.memory_space<vmem>>, vector<1x8x1xf32>
    %59 = vector.shape_cast %58 : vector<1x8x1xf32> to vector<8x1xf32>
    %60 = vector.shape_cast %54 : vector<8x1xf32> to vector<1x8x1xf32>
    tpu.vector_store %arg5[%c0_20, %c0_21, %c0_22], %60 {strides = array<i32>} : memref<1x8x1xf32, #tpu.memory_space<vmem>>, vector<1x8x1xf32>,
    return
  }
  func.func @transform_0(%arg0: i32) -> (i32, i32, i32) {
    %c0_i32 = arith.constant 0 : i32
    %c0_i32_0 = arith.constant 0 : i32
    %c0_i32_1 = arith.constant 0 : i32
    return %arg0, %c0_i32, %c0_i32_0 : i32, i32, i32
  }
  func.func @transform_1(%arg0: i32) -> (i32, i32, i32) {
    %c0_i32 = arith.constant 0 : i32
    %c0_i32_0 = arith.constant 0 : i32
    %c0_i32_1 = arith.constant 0 : i32
    %c0_i32_2 = arith.constant 0 : i32
    return %c0_i32, %c0_i32_0, %c0_i32_1 : i32, i32, i32
  }
  func.func @transform_2(%arg0: i32) -> (i32, i32) {
    %c0_i32 = arith.constant 0 : i32
    %c0_i32_0 = arith.constant 0 : i32
    %c0_i32_1 = arith.constant 0 : i32
    return %c0_i32, %c0_i32_0 : i32, i32
  }
  func.func @transform_3(%arg0: i32) -> (i32, i32, i32) {
    %c0_i32 = arith.constant 0 : i32
    %c0_i32_0 = arith.constant 0 : i32
    %c0_i32_1 = arith.constant 0 : i32
    return %arg0, %c0_i32, %c0_i32_0 : i32, i32, i32
  }
  func.func @transform_4(%arg0: i32) -> (i32, i32, i32) {
    %c0_i32 = arith.constant 0 : i32
    %c0_i32_0 = arith.constant 0 : i32
    %c0_i32_1 = arith.constant 0 : i32
    return %arg0, %c0_i32, %c0_i32_0 : i32, i32, i32
  }
}

</mosaic_0001>

<llo_original>
// kernel: tpu_custom_call.1
$region0: #{tpu_custom_call.1}
  #allocation0 [shape = 'u32[]', space=smem, size = 0x4, offset = 0x4, fixed_abs, tag = 'smem constant byte address 0x4 - core index']
  #allocation1 [shape = 'u32[144,128]{1,0:T(1,128)}', space=vmem, size = 0x12000, scoped, tag = 'internal scratch']
  %s0 = inlined_call_operand.vmem [shape: bf16[2,4,1280], index: 0, kind: input, shape index: {}]
  %s1 = inlined_call_operand.vmem [shape: bf16[9,8,4], index: 1, kind: input, shape index: {}]
  %s2 = inlined_call_operand.vmem [shape: f32[1,1152], index: 2, kind: input, shape index: {}]
  %s3 = inlined_call_operand.vmem [shape: f32[2,8,1], index: 3, kind: output, shape index: {0}]
  %s4 = inlined_call_operand.vmem [shape: f32[2,8,1], index: 4, kind: output, shape index: {1}]
  %5 = xla_tuple %s3, %s4
  %s6 = sld [smem:[#allocation0]]
  $region53: #{tpu_custom_call.1} parent=0
    _
  %s8 = ssub.s32 1, %s6
  %s9 = scalar_select 0, %s8, %s6
  loop: start=0, step=1, limit=4
  $region2: #{tpu_custom_call.1} parent=0 // loop_pre_header
    _
  $region3: #{tpu_custom_call.1} parent=0 // loop_header
    %s11 = sphi 0, %s15
    %p12 = scmp.ge.s32.totalorder %s11, 4
    %s21 = sphi 0, %s23
    %s24 = sphi 0, %s21
    %s25 = sphi 0, %s24
    %s41 = sphi 0, %s25
    %s45 = sphi 0, %s45
    %s47 = sphi 0, %s45
    %s48 = sphi 0, %s47
    %s62 = sphi 0, %s48
    %s66 = sphi 0, %s66
    %s68 = sphi 0, %s66
    %s69 = sphi 0, %s68
    %s83 = sphi 0, %s69
    %s89 = sphi 0, %s91
    %s92 = sphi 0, %s89
    %s93 = sphi 0, %s92
    %s109 = sphi 0, %s93
    %s115 = sphi 0, %s117
    %s118 = sphi 0, %s115
    %s119 = sphi 0, %s118
    %s135 = sphi 0, %s119
  $region4: #{tpu_custom_call.1} parent=0 // loop_header_branch
    %14 = sbr.rel (%p12) target = $region8
  $region5: #{tpu_custom_call.1} parent=0 // loop_body
    %s16 = ssub.s32 %s11, 1
    %s17 = ssub.s32 %s11, 2
    %s18 = sadd.s32 %s11, 1
    %s19 = ssub.s32 %s11, %s18
    %p20 = scmp.eq.s32.totalorder %s19, 0
    %s22 = sadd.s32 %s21, 1
    %s23 = scalar_select %p20, %s21, %s22
    %p26 = pneg %p20
    %p27 = scmp.eq.s32.totalorder %s11, 1
    %p28 = por %p26, %p27
    %p29 = scmp.ne.s32.totalorder %s21, %s24
    %p30 = scmp.eq.s32.totalorder %s11, 0
    %p31 = por %p29, %p30
    %p32 = scmp.ne.s32.totalorder %s21, %s24
    %p33 = scmp.eq.s32.totalorder %s16, 1
    %p34 = por %p32, %p33
    %p35 = scmp.ne.s32.totalorder %s24, %s25
    %p36 = scmp.eq.s32.totalorder %s16, 0
    %p37 = por %p35, %p36
    %p38 = scmp.ne.s32.totalorder %s24, %s25
    %p39 = scmp.eq.s32.totalorder %s17, 1
    %p40 = por %p38, %p39
    %p42 = scmp.ne.s32.totalorder %s25, %s41
    %p43 = scmp.eq.s32.totalorder %s17, 0
    %p44 = por %p42, %p43
    %s46 = sadd.s32 %s45, 1
    %p49 = scmp.eq.s32.totalorder %s11, 1
    %p50 = scmp.ne.s32.totalorder %s45, %s47
    %p51 = scmp.eq.s32.totalorder %s11, 0
    %p52 = por %p50, %p51
    %p53 = scmp.ne.s32.totalorder %s45, %s47
    %p54 = scmp.eq.s32.totalorder %s16, 1
    %p55 = por %p53, %p54
    %p56 = scmp.ne.s32.totalorder %s47, %s48
    %p57 = scmp.eq.s32.totalorder %s16, 0
    %p58 = por %p56, %p57
    %p59 = scmp.ne.s32.totalorder %s47, %s48
    %p60 = scmp.eq.s32.totalorder %s17, 1
    %p61 = por %p59, %p60
    %p63 = scmp.ne.s32.totalorder %s48, %s62
    %p64 = scmp.eq.s32.totalorder %s17, 0
    %p65 = por %p63, %p64
    %s67 = sadd.s32 %s66, 1
    %p70 = scmp.eq.s32.totalorder %s11, 1
    %p71 = scmp.ne.s32.totalorder %s66, %s68
    %p72 = scmp.eq.s32.totalorder %s11, 0
    %p73 = por %p71, %p72
    %p74 = scmp.ne.s32.totalorder %s66, %s68
    %p75 = scmp.eq.s32.totalorder %s16, 1
    %p76 = por %p74, %p75
    %p77 = scmp.ne.s32.totalorder %s68, %s69
    %p78 = scmp.eq.s32.totalorder %s16, 0
    %p79 = por %p77, %p78
    %p80 = scmp.ne.s32.totalorder %s68, %s69
    %p81 = scmp.eq.s32.totalorder %s17, 1
    %p82 = por %p80, %p81
    %p84 = scmp.ne.s32.totalorder %s69, %s83
    %p85 = scmp.eq.s32.totalorder %s17, 0
    %p86 = por %p84, %p85
    %s87 = ssub.s32 %s11, %s18
    %p88 = scmp.eq.s32.totalorder %s87, 0
    %s90 = sadd.s32 %s89, 1
    %s91 = scalar_select %p88, %s89, %s90
    %p94 = pneg %p88
    %p95 = scmp.eq.s32.totalorder %s11, 1
    %p96 = por %p94, %p95
    %p97 = scmp.ne.s32.totalorder %s89, %s92
    %p98 = scmp.eq.s32.totalorder %s11, 0
    %p99 = por %p97, %p98
    %p100 = scmp.ne.s32.totalorder %s89, %s92
    %p101 = scmp.eq.s32.totalorder %s16, 1
    %p102 = por %p100, %p101
    %p103 = scmp.ne.s32.totalorder %s92, %s93
    %p104 = scmp.eq.s32.totalorder %s16, 0
    %p105 = por %p103, %p104
    %p106 = scmp.ne.s32.totalorder %s92, %s93
    %p107 = scmp.eq.s32.totalorder %s17, 1
    %p108 = por %p106, %p107
    %p110 = scmp.ne.s32.totalorder %s93, %s109
    %p111 = scmp.eq.s32.totalorder %s17, 0
    %p112 = por %p110, %p111
    %s113 = ssub.s32 %s11, %s18
    %p114 = scmp.eq.s32.totalorder %s113, 0
    %s116 = sadd.s32 %s115, 1
    %s117 = scalar_select %p114, %s115, %s116
    %p120 = pneg %p114
    %p121 = scmp.eq.s32.totalorder %s11, 1
    %p122 = por %p120, %p121
    %p123 = scmp.ne.s32.totalorder %s115, %s118
    %p124 = scmp.eq.s32.totalorder %s11, 0
    %p125 = por %p123, %p124
    %p126 = scmp.ne.s32.totalorder %s115, %s118
    %p127 = scmp.eq.s32.totalorder %s16, 1
    %p128 = por %p126, %p127
    %p129 = scmp.ne.s32.totalorder %s118, %s119
    %p130 = scmp.eq.s32.totalorder %s16, 0
    %p131 = por %p129, %p130
    %p132 = scmp.ne.s32.totalorder %s118, %s119
    %p133 = scmp.eq.s32.totalorder %s17, 1
    %p134 = por %p132, %p133
    %p136 = scmp.ne.s32.totalorder %s119, %s135
    %p137 = scmp.eq.s32.totalorder %s17, 0
    %p138 = por %p136, %p137
    %p139 = scmp.le.s32.totalorder 1, %s11
    %p140 = scmp.lt.s32.totalorder %s11, 3
    %p141 = pnand %p139, %p140
    %p142 = pneg %p141
    // Predicated region
    $region9: #{tpu_custom_call.1} parent=5 // pred_check
      _
    $region10: #{tpu_custom_call.1} parent=5 // pred_check_branch
      %144 = sbr.rel (%p141) target = $region12
    $region11: #{tpu_custom_call.1} parent=5 // pred_region
      %s145 = ssub.s32 %s11, 1
      // Predicated region
      $region13: #{tpu_custom_call.1} parent=11 // pred_check
        %p146 = pneg %p58
      $region14: #{tpu_custom_call.1} parent=11 // pred_check_branch
        %148 = sbr.rel (%p146) target = $region16
      $region15: #{tpu_custom_call.1} parent=11 // pred_region
        _
      $region16: #{tpu_custom_call.1} parent=11 // pred_fallthru
        _
      // Predicated region
      $region17: #{tpu_custom_call.1} parent=11 // pred_check
        %p149 = pneg %p79
      $region18: #{tpu_custom_call.1} parent=11 // pred_check_branch
        %151 = sbr.rel (%p149) target = $region20
      $region19: #{tpu_custom_call.1} parent=11 // pred_region
        _
      $region20: #{tpu_custom_call.1} parent=11 // pred_fallthru
        _
    $region12: #{tpu_custom_call.1} parent=5 // pred_fallthru
      _
    %p152 = scmp.lt.s32.totalorder %s11, 2
    // Predicated region
    $region21: #{tpu_custom_call.1} parent=5 // pred_check
      %p153 = pneg %p152
    $region22: #{tpu_custom_call.1} parent=5 // pred_check_branch
      %155 = sbr.rel (%p153) target = $region24
    $region23: #{tpu_custom_call.1} parent=5 // pred_region
      // Predicated region
      $region25: #{tpu_custom_call.1} parent=23 // pred_check
        %p156 = pneg %p31
      $region26: #{tpu_custom_call.1} parent=23 // pred_check_branch
        %158 = sbr.rel (%p156) target = $region28
      $region27: #{tpu_custom_call.1} parent=23 // pred_region
        %p159 = scmp.lt.s32.totalorder %s11, 1
        %s160 = scalar_select %p159, %s11, 1
        %s161 = smul.addr %s160, 10
        %s162 = smul.addr %s161, 2
        %s163 = scalar_lea.vmem %s0, %s162
      $region28: #{tpu_custom_call.1} parent=23 // pred_fallthru
        _
    $region24: #{tpu_custom_call.1} parent=5 // pred_fallthru
      _
    %p164 = scmp.le.s32.totalorder 1, %s11
    %p165 = scmp.lt.s32.totalorder %s11, 3
    %p166 = pnand %p164, %p165
    %p167 = pneg %p166
    // Predicated region
    $region29: #{tpu_custom_call.1} parent=5 // pred_check
      _
    $region30: #{tpu_custom_call.1} parent=5 // pred_check_branch
      %169 = sbr.rel (%p166) target = $region32
    $region31: #{tpu_custom_call.1} parent=5 // pred_region
      %s170 = ssub.s32 %s11, 1
      %p171 = scmp.lt.s32.totalorder %s16, 1
      %s172 = scalar_select %p171, %s16, 1
      %s173 = smul.addr %s172, 10
      %s174 = smul.addr %s173, 2
      %s175 = scalar_lea.vmem %s0, %s174
      %p176 = pneg %p37
      %p177 = pneg %p34
      %p178 = pneg %p58
      %p179 = pneg %p55
      %p180 = pneg %p79
      %p181 = pneg %p76
      %p182 = pneg %p105
      %p183 = pneg %p102
      %p184 = scmp.lt.s32.totalorder %s16, 1
      %s185 = scalar_select %p184, %s16, 1
      %s186 = smul.addr %s185, 8
      %s187 = scalar_lea.vmem %s3, %s186
      %p188 = pneg %p131
      %p189 = pneg %p128
      %p190 = scmp.lt.s32.totalorder %s16, 1
      %s191 = scalar_select %p190, %s16, 1
      %s192 = smul.addr %s191, 8
      %s193 = scalar_lea.vmem %s4, %s192
      %p194 = scmp.lt.s32.totalorder %s16, 1
      %s195 = scalar_select %p194, %s16, 1
      %s196 = smul.addr %s195, 10
      %s197 = smul.addr %s196, 2
      %s198 = scalar_lea.vmem %s0, %s197
      %p199 = scmp.lt.s32.totalorder %s16, 1
      %s200 = scalar_select %p199, %s16, 1
      %s201 = smul.addr %s200, 8
      %s202 = scalar_lea.vmem %s3, %s201
      %p203 = scmp.lt.s32.totalorder %s16, 1
      %s204 = scalar_select %p203, %s16, 1
      %s205 = smul.addr %s204, 8
      %s206 = scalar_lea.vmem %s4, %s205
      %v208 = vld [vmem:[%s1] sm:$0xf]
      %v209 = vld [vmem:[%s1 + $0x4] sm:$0xf]
      %v210 = vld [vmem:[%s1 + $0x8] sm:$0xf]
      %v211 = vld [vmem:[%s1 + $0xc] sm:$0xf]
      %v212 = vld [vmem:[%s1 + $0x10] sm:$0xf]
      %v213 = vld [vmem:[%s1 + $0x14] sm:$0xf]
      %v214 = vld [vmem:[%s1 + $0x18] sm:$0xf]
      %v215 = vld [vmem:[%s1 + $0x1c] sm:$0xf]
      %v216 = vld [vmem:[%s1 + $0x20] sm:$0xf]
      %v217 = vld [vmem:[%s2] sm:$0xff]
      %v218 = vld [vmem:[%s2 + $0x8] sm:$0x1]
      %v219 = vld [vmem:[%s198] sm:$0xff]
      %v220 = vld [vmem:[%s198 + $0x8] sm:$0xff]
      %v221 = vld [vmem:[%s198 + $0x10] sm:$0xf]
      %v225 = vcombine.high %v219, %v219
      %v227 = vunpack.c.l.s4 1983009808
      %v228 = vunpack.c.0.s8 %v227
      %v229 = vlaneseq
      %v230 = vshrl.u32 %v229, 7
      %v231 = vsub.s32 %v228, %v230
      %v232 = vrot.slane %v219, %v231
      %v234 = vunpack.c.l.s4 1983009808
      %v235 = vunpack.c.0.s8 %v234
      %v236 = vlaneseq
      %v237 = vshrl.u32 %v236, 7
      %v238 = vsub.s32 %v235, %v237
      %v239 = vrot.slane %v225, %v238
      %v240 = vcombine.high %v232, %v232
      %v241 = vcombine.high %v239, %v239
      %v242 = vcombine.high %v220, %v220
      %v244 = vunpack.c.l.s4 1983009808
      %v245 = vunpack.c.0.s8 %v244
      %v246 = vlaneseq
      %v247 = vshrl.u32 %v246, 7
      %v248 = vsub.s32 %v245, %v247
      %v249 = vrot.slane %v220, %v248
      %v251 = vunpack.c.l.s4 1983009808
      %v252 = vunpack.c.0.s8 %v251
      %v253 = vlaneseq
      %v254 = vshrl.u32 %v253, 7
      %v255 = vsub.s32 %v252, %v254
      %v256 = vrot.slane %v242, %v255
      %v257 = vcombine.high %v249, %v249
      %v258 = vcombine.high %v256, %v256
      %v260 = vunpack.c.l.s4 1983009808
      %v261 = vunpack.c.0.s8 %v260
      %v262 = vlaneseq
      %v263 = vshrl.u32 %v262, 7
      %v264 = vsub.s32 %v261, %v263
      %v265 = vrot.slane %v221, %v264
      %v266 = vcombine.high %v265, %v265
      %267 = vrot.lane.b32.xlu0 %v232, 127
      %v268 = vpop.permute.xlu0 %267
      %269 = vrot.lane.b32.xlu0 %v240, 127
      %v270 = vpop.permute.xlu0 %269
      %271 = vrot.lane.b32.xlu0 %v239, 127
      %v272 = vpop.permute.xlu0 %271
      %273 = vrot.lane.b32.xlu0 %v241, 127
      %v274 = vpop.permute.xlu0 %273
      %275 = vrot.lane.b32.xlu0 %v249, 127
      %v276 = vpop.permute.xlu0 %275
      %277 = vrot.lane.b32.xlu0 %v257, 127
      %v278 = vpop.permute.xlu0 %277
      %279 = vrot.lane.b32.xlu0 %v256, 127
      %v280 = vpop.permute.xlu0 %279
      %281 = vrot.lane.b32.xlu0 %v258, 127
      %v282 = vpop.permute.xlu0 %281
      %283 = vrot.lane.b32.xlu0 %v265, 127
      %v284 = vpop.permute.xlu0 %283
      %285 = vrot.lane.b32.xlu0 %v266, 127
      %v286 = vpop.permute.xlu0 %285
      %vm287 = vcmask 1039360
      %v288 = vsel %vm287, %v268, %v270
      %v289 = vsel %vm287, %v270, %v272
      %v290 = vsel %vm287, %v272, %v274
      %v291 = vsel %vm287, %v274, %v276
      %v292 = vsel %vm287, %v276, %v278
      %v293 = vsel %vm287, %v278, %v280
      %v294 = vsel %vm287, %v280, %v282
      %v295 = vsel %vm287, %v282, %v284
      %v296 = vsel %vm287, %v284, %v286
      %vm297 = vcmask 31744
      %v299 = vsel %vm297, %v209, 0
      %vm301 = vcmask 1041408
      %v303 = vsel %vm301, %v288, 0
      %v306 = vsel %vm301, %v289, 0
      %v309 = vsel %vm301, %v290, 0
      %v312 = vsel %vm301, %v291, 0
      %v315 = vsel %vm301, %v292, 0
      %v318 = vsel %vm301, %v293, 0
      %v321 = vsel %vm301, %v294, 0
      %v324 = vsel %vm301, %v295, 0
      %v327 = vsel %vm301, %v296, 0
      %329 = vmatprep.subr.bf16.mxu0 0
      %330 = vmatpush1.bf16.msra.mxu0 0
      %331 = vmatprep.subr.bf16.mxu0 0
      %332 = vmatpush1.bf16.msra.mxu0 0
      %333 = vmatprep.subr.bf16.mxu0 0
      %334 = vmatpush1.bf16.msra.mxu0 0
      %335 = vmatprep.subr.bf16.mxu0 0
      %336 = vmatpush1.bf16.msra.mxu0 0
      %337 = vmatprep.subr.bf16.mxu0 0
      %338 = vmatpush1.bf16.msra.mxu0 0
      %339 = vmatprep.subr.bf16.mxu0 0
      %340 = vmatpush1.bf16.msra.mxu0 0
      %341 = vmatprep.subr.bf16.mxu0 0
      %342 = vmatpush1.bf16.msra.mxu0 0
      %343 = vmatprep.subr.bf16.mxu0 %v306
      %344 = vmatpush1.bf16.msra.mxu0 %v303
      %345 = vmatprep.subr.bf16.mxu0 0
      %346 = vmatpush2.bf16.msra.mxu0 0
      %347 = vmatprep.subr.bf16.mxu0 0
      %348 = vmatpush2.bf16.msra.mxu0 0
      %349 = vmatprep.subr.bf16.mxu0 0
      %350 = vmatpush2.bf16.msra.mxu0 0
      %351 = vmatprep.subr.bf16.mxu0 0
      %352 = vmatpush2.bf16.msra.mxu0 0
      %353 = vmatprep.subr.bf16.mxu0 0
      %354 = vmatpush2.bf16.msra.mxu0 0
      %355 = vmatprep.subr.bf16.mxu0 0
      %356 = vmatpush2.bf16.msra.mxu0 0
      %357 = vmatprep.subr.bf16.mxu0 0
      %358 = vmatpush2.bf16.msra.mxu0 0
      %359 = vmatprep.subr.bf16.mxu0 0
      %360 = vmatpush2.bf16.msra.mxu0 0
      %361 = vmatprep.mubr.bf16.mxu0 0
      %362 = vmatmul.mubr.bf16.gmra.mxu0 %v299
      %v363 = vpop.f32.mrf.mxu0
      %v364 = vadd.f32 0.0, %v363
      %v365 = vpop.f32.mrf.mxu0
      %v366 = vadd.f32 0.0, %v365
      %v367 = vpop.f32.mrf.mxu0
      %v368 = vpop.f32.mrf.mxu0
      %369 = vdwg.mxu0
      %370 = vmatprep.subr.bf16.mxu0 0
      %371 = vmatpush1.bf16.msra.mxu0 0
      %372 = vmatprep.subr.bf16.mxu0 0
      %373 = vmatpush1.bf16.msra.mxu0 0
      %374 = vmatprep.subr.bf16.mxu0 0
      %375 = vmatpush1.bf16.msra.mxu0 0
      %376 = vmatprep.subr.bf16.mxu0 0
      %377 = vmatpush1.bf16.msra.mxu0 0
      %378 = vmatprep.subr.bf16.mxu0 0
      %379 = vmatpush1.bf16.msra.mxu0 0
      %380 = vmatprep.subr.bf16.mxu0 0
      %381 = vmatpush1.bf16.msra.mxu0 0
      %382 = vmatprep.subr.bf16.mxu0 0
      %383 = vmatpush1.bf16.msra.mxu0 0
      %384 = vmatprep.subr.bf16.mxu0 %v312
      %385 = vmatpush1.bf16.msra.mxu0 %v309
      %386 = vmatprep.subr.bf16.mxu0 0
      %387 = vmatpush2.bf16.msra.mxu0 0
      %388 = vmatprep.subr.bf16.mxu0 0
      %389 = vmatpush2.bf16.msra.mxu0 0
      %390 = vmatprep.subr.bf16.mxu0 0
      %391 = vmatpush2.bf16.msra.mxu0 0
      %392 = vmatprep.subr.bf16.mxu0 0
      %393 = vmatpush2.bf16.msra.mxu0 0
      %394 = vmatprep.subr.bf16.mxu0 0
      %395 = vmatpush2.bf16.msra.mxu0 0
      %396 = vmatprep.subr.bf16.mxu0 0
      %397 = vmatpush2.bf16.msra.mxu0 0
      %398 = vmatprep.subr.bf16.mxu0 0
      %399 = vmatpush2.bf16.msra.mxu0 0
      %400 = vmatprep.subr.bf16.mxu0 0
      %401 = vmatpush2.bf16.msra.mxu0 0
      %402 = vmatprep.mubr.bf16.mxu0 0
      %403 = vmatmul.mubr.bf16.gmra.mxu0 %v299
      %v404 = vpop.f32.mrf.mxu0
      %v405 = vadd.f32 0.0, %v404
      %v406 = vpop.f32.mrf.mxu0
      %v407 = vadd.f32 0.0, %v406
      %v408 = vpop.f32.mrf.mxu0
      %v409 = vpop.f32.mrf.mxu0
      %410 = vdwg.mxu0
      %411 = vmatprep.subr.bf16.mxu0 0
      %412 = vmatpush1.bf16.msra.mxu0 0
      %413 = vmatprep.subr.bf16.mxu0 0
      %414 = vmatpush1.bf16.msra.mxu0 0
      %415 = vmatprep.subr.bf16.mxu0 0
      %416 = vmatpush1.bf16.msra.mxu0 0
      %417 = vmatprep.subr.bf16.mxu0 0
      %418 = vmatpush1.bf16.msra.mxu0 0
      %419 = vmatprep.subr.bf16.mxu0 0
      %420 = vmatpush1.bf16.msra.mxu0 0
      %421 = vmatprep.subr.bf16.mxu0 0
      %422 = vmatpush1.bf16.msra.mxu0 0
      %423 = vmatprep.subr.bf16.mxu0 0
      %424 = vmatpush1.bf16.msra.mxu0 0
      %425 = vmatprep.subr.bf16.mxu0 %v318
      %426 = vmatpush1.bf16.msra.mxu0 %v315
      %427 = vmatprep.subr.bf16.mxu0 0
      %428 = vmatpush2.bf16.msra.mxu0 0
      %429 = vmatprep.subr.bf16.mxu0 0
      %430 = vmatpush2.bf16.msra.mxu0 0
      %431 = vmatprep.subr.bf16.mxu0 0
      %432 = vmatpush2.bf16.msra.mxu0 0
      %433 = vmatprep.subr.bf16.mxu0 0
      %434 = vmatpush2.bf16.msra.mxu0 0
      %435 = vmatprep.subr.bf16.mxu0 0
      %436 = vmatpush2.bf16.msra.mxu0 0
      %437 = vmatprep.subr.bf16.mxu0 0
      %438 = vmatpush2.bf16.msra.mxu0 0
      %439 = vmatprep.subr.bf16.mxu0 0
      %440 = vmatpush2.bf16.msra.mxu0 0
      %441 = vmatprep.subr.bf16.mxu0 0
      %442 = vmatpush2.bf16.msra.mxu0 0
      %443 = vmatprep.mubr.bf16.mxu0 0
      %444 = vmatmul.mubr.bf16.gmra.mxu0 %v299
      %v445 = vpop.f32.mrf.mxu0
      %v446 = vadd.f32 0.0, %v445
      %v447 = vpop.f32.mrf.mxu0
      %v448 = vadd.f32 0.0, %v447
      %v449 = vpop.f32.mrf.mxu0
      %v450 = vpop.f32.mrf.mxu0
      %451 = vdwg.mxu0
      %452 = vmatprep.subr.bf16.mxu0 0
      %453 = vmatpush1.bf16.msra.mxu0 0
      %454 = vmatprep.subr.bf16.mxu0 0
      %455 = vmatpush1.bf16.msra.mxu0 0
      %456 = vmatprep.subr.bf16.mxu0 0
      %457 = vmatpush1.bf16.msra.mxu0 0
      %458 = vmatprep.subr.bf16.mxu0 0
      %459 = vmatpush1.bf16.msra.mxu0 0
      %460 = vmatprep.subr.bf16.mxu0 0
      %461 = vmatpush1.bf16.msra.mxu0 0
      %462 = vmatprep.subr.bf16.mxu0 0
      %463 = vmatpush1.bf16.msra.mxu0 0
      %464 = vmatprep.subr.bf16.mxu0 0
      %465 = vmatpush1.bf16.msra.mxu0 0
      %466 = vmatprep.subr.bf16.mxu0 %v324
      %467 = vmatpush1.bf16.msra.mxu0 %v321
      %468 = vmatprep.subr.bf16.mxu0 0
      %469 = vmatpush2.bf16.msra.mxu0 0
      %470 = vmatprep.subr.bf16.mxu0 0
      %471 = vmatpush2.bf16.msra.mxu0 0
      %472 = vmatprep.subr.bf16.mxu0 0
      %473 = vmatpush2.bf16.msra.mxu0 0
      %474 = vmatprep.subr.bf16.mxu0 0
      %475 = vmatpush2.bf16.msra.mxu0 0
      %476 = vmatprep.subr.bf16.mxu0 0
      %477 = vmatpush2.bf16.msra.mxu0 0
      %478 = vmatprep.subr.bf16.mxu0 0
      %479 = vmatpush2.bf16.msra.mxu0 0
      %480 = vmatprep.subr.bf16.mxu0 0
      %481 = vmatpush2.bf16.msra.mxu0 0
      %482 = vmatprep.subr.bf16.mxu0 0
      %483 = vmatpush2.bf16.msra.mxu0 0
      %484 = vmatprep.mubr.bf16.mxu0 0
      %485 = vmatmul.mubr.bf16.gmra.mxu0 %v299
      %v486 = vpop.f32.mrf.mxu0
      %v487 = vadd.f32 0.0, %v486
      %v488 = vpop.f32.mrf.mxu0
      %v489 = vadd.f32 0.0, %v488
      %v490 = vpop.f32.mrf.mxu0
      %v491 = vpop.f32.mrf.mxu0
      %492 = vdwg.mxu0
      %493 = vmatprep.subr.bf16.mxu0 0
      %494 = vmatpush1.bf16.msra.mxu0 0
      %495 = vmatprep.subr.bf16.mxu0 0
      %496 = vmatpush1.bf16.msra.mxu0 0
      %497 = vmatprep.subr.bf16.mxu0 0
      %498 = vmatpush1.bf16.msra.mxu0 0
      %499 = vmatprep.subr.bf16.mxu0 0
      %500 = vmatpush1.bf16.msra.mxu0 0
      %501 = vmatprep.subr.bf16.mxu0 0
      %502 = vmatpush1.bf16.msra.mxu0 0
      %503 = vmatprep.subr.bf16.mxu0 0
      %504 = vmatpush1.bf16.msra.mxu0 0
      %505 = vmatprep.subr.bf16.mxu0 0
      %506 = vmatpush1.bf16.msra.mxu0 0
      %507 = vmatprep.subr.bf16.mxu0 0
      %508 = vmatpush1.bf16.msra.mxu0 %v327
      %509 = vmatprep.subr.bf16.mxu0 0
      %510 = vmatpush2.bf16.msra.mxu0 0
      %511 = vmatprep.subr.bf16.mxu0 0
      %512 = vmatpush2.bf16.msra.mxu0 0
      %513 = vmatprep.subr.bf16.mxu0 0
      %514 = vmatpush2.bf16.msra.mxu0 0
      %515 = vmatprep.subr.bf16.mxu0 0
      %516 = vmatpush2.bf16.msra.mxu0 0
      %517 = vmatprep.subr.bf16.mxu0 0
      %518 = vmatpush2.bf16.msra.mxu0 0
      %519 = vmatprep.subr.bf16.mxu0 0
      %520 = vmatpush2.bf16.msra.mxu0 0
      %521 = vmatprep.subr.bf16.mxu0 0
      %522 = vmatpush2.bf16.msra.mxu0 0
      %523 = vmatprep.subr.bf16.mxu0 0
      %524 = vmatpush2.bf16.msra.mxu0 0
      %525 = vmatprep.mubr.bf16.mxu0 0
      %526 = vmatmul.mubr.bf16.gmra.mxu0 %v299
      %v527 = vpop.f32.mrf.mxu0
      %v528 = vadd.f32 0.0, %v527
      %v529 = vpop.f32.mrf.mxu0
      %v530 = vpop.f32.mrf.mxu0
      %v531 = vpop.f32.mrf.mxu0
      %532 = vdwg.mxu0
      %v534 = vsel %vm297, %v208, 0
      %v537 = vsel %vm301, %v232, 0
      %v540 = vsel %vm301, %v240, 0
      %v543 = vsel %vm301, %v239, 0
      %v546 = vsel %vm301, %v241, 0
      %v549 = vsel %vm301, %v249, 0
      %v552 = vsel %vm301, %v257, 0
      %v555 = vsel %vm301, %v256, 0
      %v558 = vsel %vm301, %v258, 0
      %v561 = vsel %vm301, %v265, 0
      %563 = vmatprep.subr.bf16.mxu0 0
      %564 = vmatpush1.bf16.msra.mxu0 0
      %565 = vmatprep.subr.bf16.mxu0 0
      %566 = vmatpush1.bf16.msra.mxu0 0
      %567 = vmatprep.subr.bf16.mxu0 0
      %568 = vmatpush1.bf16.msra.mxu0 0
      %569 = vmatprep.subr.bf16.mxu0 0
      %570 = vmatpush1.bf16.msra.mxu0 0
      %571 = vmatprep.subr.bf16.mxu0 0
      %572 = vmatpush1.bf16.msra.mxu0 0
      %573 = vmatprep.subr.bf16.mxu0 0
      %574 = vmatpush1.bf16.msra.mxu0 0
      %575 = vmatprep.subr.bf16.mxu0 0
      %576 = vmatpush1.bf16.msra.mxu0 0
      %577 = vmatprep.subr.bf16.mxu0 %v540
      %578 = vmatpush1.bf16.msra.mxu0 %v537
      %579 = vmatprep.subr.bf16.mxu0 0
      %580 = vmatpush2.bf16.msra.mxu0 0
      %581 = vmatprep.subr.bf16.mxu0 0
      %582 = vmatpush2.bf16.msra.mxu0 0
      %583 = vmatprep.subr.bf16.mxu0 0
      %584 = vmatpush2.bf16.msra.mxu0 0
      %585 = vmatprep.subr.bf16.mxu0 0
      %586 = vmatpush2.bf16.msra.mxu0 0
      %587 = vmatprep.subr.bf16.mxu0 0
      %588 = vmatpush2.bf16.msra.mxu0 0
      %589 = vmatprep.subr.bf16.mxu0 0
      %590 = vmatpush2.bf16.msra.mxu0 0
      %591 = vmatprep.subr.bf16.mxu0 0
      %592 = vmatpush2.bf16.msra.mxu0 0
      %593 = vmatprep.subr.bf16.mxu0 0
      %594 = vmatpush2.bf16.msra.mxu0 0
      %595 = vmatprep.mubr.bf16.mxu0 0
      %596 = vmatmul.mubr.bf16.gmra.mxu0 %v534
      %v597 = vpop.f32.mrf.mxu0
      %v598 = vadd.f32 %v364, %v597
      %v599 = vpop.f32.mrf.mxu0
      %v600 = vadd.f32 %v366, %v599
      %v601 = vpop.f32.mrf.mxu0
      %v602 = vpop.f32.mrf.mxu0
      %603 = vdwg.mxu0
      %604 = vmatprep.subr.bf16.mxu0 0
      %605 = vmatpush1.bf16.msra.mxu0 0
      %606 = vmatprep.subr.bf16.mxu0 0
      %607 = vmatpush1.bf16.msra.mxu0 0
      %608 = vmatprep.subr.bf16.mxu0 0
      %609 = vmatpush1.bf16.msra.mxu0 0
      %610 = vmatprep.subr.bf16.mxu0 0
      %611 = vmatpush1.bf16.msra.mxu0 0
      %612 = vmatprep.subr.bf16.mxu0 0
      %613 = vmatpush1.bf16.msra.mxu0 0
      %614 = vmatprep.subr.bf16.mxu0 0
      %615 = vmatpush1.bf16.msra.mxu0 0
      %616 = vmatprep.subr.bf16.mxu0 0
      %617 = vmatpush1.bf16.msra.mxu0 0
      %618 = vmatprep.subr.bf16.mxu0 %v546
      %619 = vmatpush1.bf16.msra.mxu0 %v543
      %620 = vmatprep.subr.bf16.mxu0 0
      %621 = vmatpush2.bf16.msra.mxu0 0
      %622 = vmatprep.subr.bf16.mxu0 0
      %623 = vmatpush2.bf16.msra.mxu0 0
      %624 = vmatprep.subr.bf16.mxu0 0
      %625 = vmatpush2.bf16.msra.mxu0 0
      %626 = vmatprep.subr.bf16.mxu0 0
      %627 = vmatpush2.bf16.msra.mxu0 0
      %628 = vmatprep.subr.bf16.mxu0 0
      %629 = vmatpush2.bf16.msra.mxu0 0
      %630 = vmatprep.subr.bf16.mxu0 0
      %631 = vmatpush2.bf16.msra.mxu0 0
      %632 = vmatprep.subr.bf16.mxu0 0
      %633 = vmatpush2.bf16.msra.mxu0 0
      %634 = vmatprep.subr.bf16.mxu0 0
      %635 = vmatpush2.bf16.msra.mxu0 0
      %636 = vmatprep.mubr.bf16.mxu0 0
      %637 = vmatmul.mubr.bf16.gmra.mxu0 %v534
      %v638 = vpop.f32.mrf.mxu0
      %v639 = vadd.f32 %v405, %v638
      %v640 = vpop.f32.mrf.mxu0
      %v641 = vadd.f32 %v407, %v640
      %v642 = vpop.f32.mrf.mxu0
      %v643 = vpop.f32.mrf.mxu0
      %644 = vdwg.mxu0
      %645 = vmatprep.subr.bf16.mxu0 0
      %646 = vmatpush1.bf16.msra.mxu0 0
      %647 = vmatprep.subr.bf16.mxu0 0
      %648 = vmatpush1.bf16.msra.mxu0 0
      %649 = vmatprep.subr.bf16.mxu0 0
      %650 = vmatpush1.bf16.msra.mxu0 0
      %651 = vmatprep.subr.bf16.mxu0 0
      %652 = vmatpush1.bf16.msra.mxu0 0
      %653 = vmatprep.subr.bf16.mxu0 0
      %654 = vmatpush1.bf16.msra.mxu0 0
      %655 = vmatprep.subr.bf16.mxu0 0
      %656 = vmatpush1.bf16.msra.mxu0 0
      %657 = vmatprep.subr.bf16.mxu0 0
      %658 = vmatpush1.bf16.msra.mxu0 0
      %659 = vmatprep.subr.bf16.mxu0 %v552
      %660 = vmatpush1.bf16.msra.mxu0 %v549
      %661 = vmatprep.subr.bf16.mxu0 0
      %662 = vmatpush2.bf16.msra.mxu0 0
      %663 = vmatprep.subr.bf16.mxu0 0
      %664 = vmatpush2.bf16.msra.mxu0 0
      %665 = vmatprep.subr.bf16.mxu0 0
      %666 = vmatpush2.bf16.msra.mxu0 0
      %667 = vmatprep.subr.bf16.mxu0 0
      %668 = vmatpush2.bf16.msra.mxu0 0
      %669 = vmatprep.subr.bf16.mxu0 0
      %670 = vmatpush2.bf16.msra.mxu0 0
      %671 = vmatprep.subr.bf16.mxu0 0
      %672 = vmatpush2.bf16.msra.mxu0 0
      %673 = vmatprep.subr.bf16.mxu0 0
      %674 = vmatpush2.bf16.msra.mxu0 0
      %675 = vmatprep.subr.bf16.mxu0 0
      %676 = vmatpush2.bf16.msra.mxu0 0
      %677 = vmatprep.mubr.bf16.mxu0 0
      %678 = vmatmul.mubr.bf16.gmra.mxu0 %v534
      %v679 = vpop.f32.mrf.mxu0
      %v680 = vadd.f32 %v446, %v679
      %v681 = vpop.f32.mrf.mxu0
      %v682 = vadd.f32 %v448, %v681
      %v683 = vpop.f32.mrf.mxu0
      %v684 = vpop.f32.mrf.mxu0
      %685 = vdwg.mxu0
      %686 = vmatprep.subr.bf16.mxu0 0
      %687 = vmatpush1.bf16.msra.mxu0 0
      %688 = vmatprep.subr.bf16.mxu0 0
      %689 = vmatpush1.bf16.msra.mxu0 0
      %690 = vmatprep.subr.bf16.mxu0 0
      %691 = vmatpush1.bf16.msra.mxu0 0
      %692 = vmatprep.subr.bf16.mxu0 0
      %693 = vmatpush1.bf16.msra.mxu0 0
      %694 = vmatprep.subr.bf16.mxu0 0
      %695 = vmatpush1.bf16.msra.mxu0 0
      %696 = vmatprep.subr.bf16.mxu0 0
      %697 = vmatpush1.bf16.msra.mxu0 0
      %698 = vmatprep.subr.bf16.mxu0 0
      %699 = vmatpush1.bf16.msra.mxu0 0
      %700 = vmatprep.subr.bf16.mxu0 %v558
      %701 = vmatpush1.bf16.msra.mxu0 %v555
      %702 = vmatprep.subr.bf16.mxu0 0
      %703 = vmatpush2.bf16.msra.mxu0 0
      %704 = vmatprep.subr.bf16.mxu0 0
      %705 = vmatpush2.bf16.msra.mxu0 0
      %706 = vmatprep.subr.bf16.mxu0 0
      %707 = vmatpush2.bf16.msra.mxu0 0
      %708 = vmatprep.subr.bf16.mxu0 0
      %709 = vmatpush2.bf16.msra.mxu0 0
      %710 = vmatprep.subr.bf16.mxu0 0
      %711 = vmatpush2.bf16.msra.mxu0 0
      %712 = vmatprep.subr.bf16.mxu0 0
      %713 = vmatpush2.bf16.msra.mxu0 0
      %714 = vmatprep.subr.bf16.mxu0 0
      %715 = vmatpush2.bf16.msra.mxu0 0
      %716 = vmatprep.subr.bf16.mxu0 0
      %717 = vmatpush2.bf16.msra.mxu0 0
      %718 = vmatprep.mubr.bf16.mxu0 0
      %719 = vmatmul.mubr.bf16.gmra.mxu0 %v534
      %v720 = vpop.f32.mrf.mxu0
      %v721 = vadd.f32 %v487, %v720
      %v722 = vpop.f32.mrf.mxu0
      %v723 = vadd.f32 %v489, %v722
      %v724 = vpop.f32.mrf.mxu0
      %v725 = vpop.f32.mrf.mxu0
      %726 = vdwg.mxu0
      %727 = vmatprep.subr.bf16.mxu0 0
      %728 = vmatpush1.bf16.msra.mxu0 0
      %729 = vmatprep.subr.bf16.mxu0 0
      %730 = vmatpush1.bf16.msra.mxu0 0
      %731 = vmatprep.subr.bf16.mxu0 0
      %732 = vmatpush1.bf16.msra.mxu0 0
      %733 = vmatprep.subr.bf16.mxu0 0
      %734 = vmatpush1.bf16.msra.mxu0 0
      %735 = vmatprep.subr.bf16.mxu0 0
      %736 = vmatpush1.bf16.msra.mxu0 0
      %737 = vmatprep.subr.bf16.mxu0 0
      %738 = vmatpush1.bf16.msra.mxu0 0
      %739 = vmatprep.subr.bf16.mxu0 0
      %740 = vmatpush1.bf16.msra.mxu0 0
      %741 = vmatprep.subr.bf16.mxu0 0
      %742 = vmatpush1.bf16.msra.mxu0 %v561
      %743 = vmatprep.subr.bf16.mxu0 0
      %744 = vmatpush2.bf16.msra.mxu0 0
      %745 = vmatprep.subr.bf16.mxu0 0
      %746 = vmatpush2.bf16.msra.mxu0 0
      %747 = vmatprep.subr.bf16.mxu0 0
      %748 = vmatpush2.bf16.msra.mxu0 0
      %749 = vmatprep.subr.bf16.mxu0 0
      %750 = vmatpush2.bf16.msra.mxu0 0
      %751 = vmatprep.subr.bf16.mxu0 0
      %752 = vmatpush2.bf16.msra.mxu0 0
      %753 = vmatprep.subr.bf16.mxu0 0
      %754 = vmatpush2.bf16.msra.mxu0 0
      %755 = vmatprep.subr.bf16.mxu0 0
      %756 = vmatpush2.bf16.msra.mxu0 0
      %757 = vmatprep.subr.bf16.mxu0 0
      %758 = vmatpush2.bf16.msra.mxu0 0
      %759 = vmatprep.mubr.bf16.mxu0 0
      %760 = vmatmul.mubr.bf16.gmra.mxu0 %v534
      %v761 = vpop.f32.mrf.mxu0
      %v762 = vadd.f32 %v528, %v761
      %v763 = vpop.f32.mrf.mxu0
      %v764 = vpop.f32.mrf.mxu0
      %v765 = vpop.f32.mrf.mxu0
      %766 = vdwg.mxu0
      %767 = vrot.lane.b32.xlu0 %v232, 126
      %v768 = vpop.permute.xlu0 %767
      %769 = vrot.lane.b32.xlu0 %v240, 126
      %v770 = vpop.permute.xlu0 %769
      %771 = vrot.lane.b32.xlu0 %v239, 126
      %v772 = vpop.permute.xlu0 %771
      %773 = vrot.lane.b32.xlu0 %v241, 126
      %v774 = vpop.permute.xlu0 %773
      %775 = vrot.lane.b32.xlu0 %v249, 126
      %v776 = vpop.permute.xlu0 %775
      %777 = vrot.lane.b32.xlu0 %v257, 126
      %v778 = vpop.permute.xlu0 %777
      %779 = vrot.lane.b32.xlu0 %v256, 126
      %v780 = vpop.permute.xlu0 %779
      %781 = vrot.lane.b32.xlu0 %v258, 126
      %v782 = vpop.permute.xlu0 %781
      %783 = vrot.lane.b32.xlu0 %v265, 126
      %v784 = vpop.permute.xlu0 %783
      %785 = vrot.lane.b32.xlu0 %v266, 126
      %v786 = vpop.permute.xlu0 %785
      %vm787 = vcmask 1031168
      %v788 = vsel %vm787, %v768, %v770
      %v789 = vsel %vm787, %v770, %v772
      %v790 = vsel %vm787, %v772, %v774
      %v791 = vsel %vm787, %v774, %v776
      %v792 = vsel %vm787, %v776, %v778
      %v793 = vsel %vm787, %v778, %v780
      %v794 = vsel %vm787, %v780, %v782
      %v795 = vsel %vm787, %v782, %v784
      %v796 = vsel %vm787, %v784, %v786
      %v798 = vsel %vm297, %v210, 0
      %v801 = vsel %vm301, %v788, 0
      %v804 = vsel %vm301, %v789, 0
      %v807 = vsel %vm301, %v790, 0
      %v810 = vsel %vm301, %v791, 0
      %v813 = vsel %vm301, %v792, 0
      %v816 = vsel %vm301, %v793, 0
      %v819 = vsel %vm301, %v794, 0
      %v822 = vsel %vm301, %v795, 0
      %v825 = vsel %vm301, %v796, 0
      %827 = vmatprep.subr.bf16.mxu0 0
      %828 = vmatpush1.bf16.msra.mxu0 0
      %829 = vmatprep.subr.bf16.mxu0 0
      %830 = vmatpush1.bf16.msra.mxu0 0
      %831 = vmatprep.subr.bf16.mxu0 0
      %832 = vmatpush1.bf16.msra.mxu0 0
      %833 = vmatprep.subr.bf16.mxu0 0
      %834 = vmatpush1.bf16.msra.mxu0 0
      %835 = vmatprep.subr.bf16.mxu0 0
      %836 = vmatpush1.bf16.msra.mxu0 0
      %837 = vmatprep.subr.bf16.mxu0 0
      %838 = vmatpush1.bf16.msra.mxu0 0
      %839 = vmatprep.subr.bf16.mxu0 0
      %840 = vmatpush1.bf16.msra.mxu0 0
      %841 = vmatprep.subr.bf16.mxu0 %v804
      %842 = vmatpush1.bf16.msra.mxu0 %v801
      %843 = vmatprep.subr.bf16.mxu0 0
      %844 = vmatpush2.bf16.msra.mxu0 0
      %845 = vmatprep.subr.bf16.mxu0 0
      %846 = vmatpush2.bf16.msra.mxu0 0
      %847 = vmatprep.subr.bf16.mxu0 0
      %848 = vmatpush2.bf16.msra.mxu0 0
      %849 = vmatprep.subr.bf16.mxu0 0
      %850 = vmatpush2.bf16.msra.mxu0 0
      %851 = vmatprep.subr.bf16.mxu0 0
      %852 = vmatpush2.bf16.msra.mxu0 0
      %853 = vmatprep.subr.bf16.mxu0 0
      %854 = vmatpush2.bf16.msra.mxu0 0
      %855 = vmatprep.subr.bf16.mxu0 0
      %856 = vmatpush2.bf16.msra.mxu0 0
      %857 = vmatprep.subr.bf16.mxu0 0
      %858 = vmatpush2.bf16.msra.mxu0 0
      %859 = vmatprep.mubr.bf16.mxu0 0
      %860 = vmatmul.mubr.bf16.gmra.mxu0 %v798
      %v861 = vpop.f32.mrf.mxu0
      %v862 = vadd.f32 0.0, %v861
      %v863 = vpop.f32.mrf.mxu0
      %v864 = vadd.f32 0.0, %v863
      %v865 = vpop.f32.mrf.mxu0
      %v866 = vpop.f32.mrf.mxu0
      %867 = vdwg.mxu0
      %868 = vmatprep.subr.bf16.mxu0 0
      %869 = vmatpush1.bf16.msra.mxu0 0
      %870 = vmatprep.subr.bf16.mxu0 0
      %871 = vmatpush1.bf16.msra.mxu0 0
      %872 = vmatprep.subr.bf16.mxu0 0
      %873 = vmatpush1.bf16.msra.mxu0 0
      %874 = vmatprep.subr.bf16.mxu0 0
      %875 = vmatpush1.bf16.msra.mxu0 0
      %876 = vmatprep.subr.bf16.mxu0 0
      %877 = vmatpush1.bf16.msra.mxu0 0
      %878 = vmatprep.subr.bf16.mxu0 0
      %879 = vmatpush1.bf16.msra.mxu0 0
      %880 = vmatprep.subr.bf16.mxu0 0
      %881 = vmatpush1.bf16.msra.mxu0 0
      %882 = vmatprep.subr.bf16.mxu0 %v810
      %883 = vmatpush1.bf16.msra.mxu0 %v807
      %884 = vmatprep.subr.bf16.mxu0 0
      %885 = vmatpush2.bf16.msra.mxu0 0
      %886 = vmatprep.subr.bf16.mxu0 0
      %887 = vmatpush2.bf16.msra.mxu0 0
      %888 = vmatprep.subr.bf16.mxu0 0
      %889 = vmatpush2.bf16.msra.mxu0 0
      %890 = vmatprep.subr.bf16.mxu0 0
      %891 = vmatpush2.bf16.msra.mxu0 0
      %892 = vmatprep.subr.bf16.mxu0 0
      %893 = vmatpush2.bf16.msra.mxu0 0
      %894 = vmatprep.subr.bf16.mxu0 0
      %895 = vmatpush2.bf16.msra.mxu0 0
      %896 = vmatprep.subr.bf16.mxu0 0
      %897 = vmatpush2.bf16.msra.mxu0 0
      %898 = vmatprep.subr.bf16.mxu0 0
      %899 = vmatpush2.bf16.msra.mxu0 0
      %900 = vmatprep.mubr.bf16.mxu0 0
      %901 = vmatmul.mubr.bf16.gmra.mxu0 %v798
      %v902 = vpop.f32.mrf.mxu0
      %v903 = vadd.f32 0.0, %v902
      %v904 = vpop.f32.mrf.mxu0
      %v905 = vadd.f32 0.0, %v904
      %v906 = vpop.f32.mrf.mxu0
      %v907 = vpop.f32.mrf.mxu0
      %908 = vdwg.mxu0
      %909 = vmatprep.subr.bf16.mxu0 0
      %910 = vmatpush1.bf16.msra.mxu0 0
      %911 = vmatprep.subr.bf16.mxu0 0
      %912 = vmatpush1.bf16.msra.mxu0 0
      %913 = vmatprep.subr.bf16.mxu0 0
      %914 = vmatpush1.bf16.msra.mxu0 0
      %915 = vmatprep.subr.bf16.mxu0 0
      %916 = vmatpush1.bf16.msra.mxu0 0
      %917 = vmatprep.subr.bf16.mxu0 0
      %918 = vmatpush1.bf16.msra.mxu0 0
      %919 = vmatprep.subr.bf16.mxu0 0
      %920 = vmatpush1.bf16.msra.mxu0 0
      %921 = vmatprep.subr.bf16.mxu0 0
      %922 = vmatpush1.bf16.msra.mxu0 0
      %923 = vmatprep.subr.bf16.mxu0 %v816
      %924 = vmatpush1.bf16.msra.mxu0 %v813
      %925 = vmatprep.subr.bf16.mxu0 0
      %926 = vmatpush2.bf16.msra.mxu0 0
      %927 = vmatprep.subr.bf16.mxu0 0
      %928 = vmatpush2.bf16.msra.mxu0 0
      %929 = vmatprep.subr.bf16.mxu0 0
      %930 = vmatpush2.bf16.msra.mxu0 0
      %931 = vmatprep.subr.bf16.mxu0 0
      %932 = vmatpush2.bf16.msra.mxu0 0
      %933 = vmatprep.subr.bf16.mxu0 0
      %934 = vmatpush2.bf16.msra.mxu0 0
      %935 = vmatprep.subr.bf16.mxu0 0
      %936 = vmatpush2.bf16.msra.mxu0 0
      %937 = vmatprep.subr.bf16.mxu0 0
      %938 = vmatpush2.bf16.msra.mxu0 0
      %939 = vmatprep.subr.bf16.mxu0 0
      %940 = vmatpush2.bf16.msra.mxu0 0
      %941 = vmatprep.mubr.bf16.mxu0 0
      %942 = vmatmul.mubr.bf16.gmra.mxu0 %v798
      %v943 = vpop.f32.mrf.mxu0
      %v944 = vadd.f32 0.0, %v943
      %v945 = vpop.f32.mrf.mxu0
      %v946 = vadd.f32 0.0, %v945
      %v947 = vpop.f32.mrf.mxu0
      %v948 = vpop.f32.mrf.mxu0
      %949 = vdwg.mxu0
      %950 = vmatprep.subr.bf16.mxu0 0
      %951 = vmatpush1.bf16.msra.mxu0 0
      %952 = vmatprep.subr.bf16.mxu0 0
      %953 = vmatpush1.bf16.msra.mxu0 0
      %954 = vmatprep.subr.bf16.mxu0 0
      %955 = vmatpush1.bf16.msra.mxu0 0
      %956 = vmatprep.subr.bf16.mxu0 0
      %957 = vmatpush1.bf16.msra.mxu0 0
      %958 = vmatprep.subr.bf16.mxu0 0
      %959 = vmatpush1.bf16.msra.mxu0 0
      %960 = vmatprep.subr.bf16.mxu0 0
      %961 = vmatpush1.bf16.msra.mxu0 0
      %962 = vmatprep.subr.bf16.mxu0 0
      %963 = vmatpush1.bf16.msra.mxu0 0
      %964 = vmatprep.subr.bf16.mxu0 %v822
      %965 = vmatpush1.bf16.msra.mxu0 %v819
      %966 = vmatprep.subr.bf16.mxu0 0
      %967 = vmatpush2.bf16.msra.mxu0 0
      %968 = vmatprep.subr.bf16.mxu0 0
      %969 = vmatpush2.bf16.msra.mxu0 0
      %970 = vmatprep.subr.bf16.mxu0 0
      %971 = vmatpush2.bf16.msra.mxu0 0
      %972 = vmatprep.subr.bf16.mxu0 0
      %973 = vmatpush2.bf16.msra.mxu0 0
      %974 = vmatprep.subr.bf16.mxu0 0
      %975 = vmatpush2.bf16.msra.mxu0 0
      %976 = vmatprep.subr.bf16.mxu0 0
      %977 = vmatpush2.bf16.msra.mxu0 0
      %978 = vmatprep.subr.bf16.mxu0 0
      %979 = vmatpush2.bf16.msra.mxu0 0
      %980 = vmatprep.subr.bf16.mxu0 0
      %981 = vmatpush2.bf16.msra.mxu0 0
      %982 = vmatprep.mubr.bf16.mxu0 0
      %983 = vmatmul.mubr.bf16.gmra.mxu0 %v798
      %v984 = vpop.f32.mrf.mxu0
      %v985 = vadd.f32 0.0, %v984
      %v986 = vpop.f32.mrf.mxu0
      %v987 = vadd.f32 0.0, %v986
      %v988 = vpop.f32.mrf.mxu0
      %v989 = vpop.f32.mrf.mxu0
      %990 = vdwg.mxu0
      %991 = vmatprep.subr.bf16.mxu0 0
      %992 = vmatpush1.bf16.msra.mxu0 0
      %993 = vmatprep.subr.bf16.mxu0 0
      %994 = vmatpush1.bf16.msra.mxu0 0
      %995 = vmatprep.subr.bf16.mxu0 0
      %996 = vmatpush1.bf16.msra.mxu0 0
      %997 = vmatprep.subr.bf16.mxu0 0
      %998 = vmatpush1.bf16.msra.mxu0 0
      %999 = vmatprep.subr.bf16.mxu0 0
      %1000 = vmatpush1.bf16.msra.mxu0 0
      %1001 = vmatprep.subr.bf16.mxu0 0
      %1002 = vmatpush1.bf16.msra.mxu0 0
      %1003 = vmatprep.subr.bf16.mxu0 0
      %1004 = vmatpush1.bf16.msra.mxu0 0
      %1005 = vmatprep.subr.bf16.mxu0 0
      %1006 = vmatpush1.bf16.msra.mxu0 %v825
      %1007 = vmatprep.subr.bf16.mxu0 0
      %1008 = vmatpush2.bf16.msra.mxu0 0
      %1009 = vmatprep.subr.bf16.mxu0 0
      %1010 = vmatpush2.bf16.msra.mxu0 0
      %1011 = vmatprep.subr.bf16.mxu0 0
      %1012 = vmatpush2.bf16.msra.mxu0 0
      %1013 = vmatprep.subr.bf16.mxu0 0
      %1014 = vmatpush2.bf16.msra.mxu0 0
      %1015 = vmatprep.subr.bf16.mxu0 0
      %1016 = vmatpush2.bf16.msra.mxu0 0
      %1017 = vmatprep.subr.bf16.mxu0 0
      %1018 = vmatpush2.bf16.msra.mxu0 0
      %1019 = vmatprep.subr.bf16.mxu0 0
      %1020 = vmatpush2.bf16.msra.mxu0 0
      %1021 = vmatprep.subr.bf16.mxu0 0
      %1022 = vmatpush2.bf16.msra.mxu0 0
      %1023 = vmatprep.mubr.bf16.mxu0 0
      %1024 = vmatmul.mubr.bf16.gmra.mxu0 %v798
      %v1025 = vpop.f32.mrf.mxu0
      %v1026 = vadd.f32 0.0, %v1025
      %v1027 = vpop.f32.mrf.mxu0
      %v1028 = vpop.f32.mrf.mxu0
      %v1029 = vpop.f32.mrf.mxu0
      %1030 = vdwg.mxu0
      %v1031 = vadd.f32 %v598, %v862
      %v1032 = vadd.f32 %v600, %v864
      %v1033 = vadd.f32 %v639, %v903
      %v1034 = vadd.f32 %v641, %v905
      %v1035 = vadd.f32 %v680, %v944
      %v1036 = vadd.f32 %v682, %v946
      %v1037 = vadd.f32 %v721, %v985
      %v1038 = vadd.f32 %v723, %v987
      %v1039 = vadd.f32 %v762, %v1026
      %1040 = vrot.lane.b32.xlu0 %v232, 95
      %v1041 = vpop.permute.xlu0 %1040
      %1042 = vrot.lane.b32.xlu0 %v240, 95
      %v1043 = vpop.permute.xlu0 %1042
      %1044 = vrot.lane.b32.xlu0 %v239, 95
      %v1045 = vpop.permute.xlu0 %1044
      %1046 = vrot.lane.b32.xlu0 %v241, 95
      %v1047 = vpop.permute.xlu0 %1046
      %1048 = vrot.lane.b32.xlu0 %v249, 95
      %v1049 = vpop.permute.xlu0 %1048
      %1050 = vrot.lane.b32.xlu0 %v257, 95
      %v1051 = vpop.permute.xlu0 %1050
      %1052 = vrot.lane.b32.xlu0 %v256, 95
      %v1053 = vpop.permute.xlu0 %1052
      %1054 = vrot.lane.b32.xlu0 %v258, 95
      %v1055 = vpop.permute.xlu0 %1054
      %1056 = vrot.lane.b32.xlu0 %v265, 95
      %v1057 = vpop.permute.xlu0 %1056
      %1058 = vrot.lane.b32.xlu0 %v266, 95
      %v1059 = vpop.permute.xlu0 %1058
      %vm1060 = vcmask 777216
      %v1061 = vsel %vm1060, %v1041, %v1043
      %v1062 = vsel %vm1060, %v1043, %v1045
      %v1063 = vsel %vm1060, %v1045, %v1047
      %v1064 = vsel %vm1060, %v1047, %v1049
      %v1065 = vsel %vm1060, %v1049, %v1051
      %v1066 = vsel %vm1060, %v1051, %v1053
      %v1067 = vsel %vm1060, %v1053, %v1055
      %v1068 = vsel %vm1060, %v1055, %v1057
      %v1069 = vsel %vm1060, %v1057, %v1059
      %v1071 = vsel %vm297, %v211, 0
      %v1074 = vsel %vm301, %v1061, 0
      %v1077 = vsel %vm301, %v1062, 0
      %v1080 = vsel %vm301, %v1063, 0
      %v1083 = vsel %vm301, %v1064, 0
      %v1086 = vsel %vm301, %v1065, 0
      %v1089 = vsel %vm301, %v1066, 0
      %v1092 = vsel %vm301, %v1067, 0
      %v1095 = vsel %vm301, %v1068, 0
      %v1098 = vsel %vm301, %v1069, 0
      %1100 = vmatprep.subr.bf16.mxu0 0
      %1101 = vmatpush1.bf16.msra.mxu0 0
      %1102 = vmatprep.subr.bf16.mxu0 0
      %1103 = vmatpush1.bf16.msra.mxu0 0
      %1104 = vmatprep.subr.bf16.mxu0 0
      %1105 = vmatpush1.bf16.msra.mxu0 0
      %1106 = vmatprep.subr.bf16.mxu0 0
      %1107 = vmatpush1.bf16.msra.mxu0 0
      %1108 = vmatprep.subr.bf16.mxu0 0
      %1109 = vmatpush1.bf16.msra.mxu0 0
      %1110 = vmatprep.subr.bf16.mxu0 0
      %1111 = vmatpush1.bf16.msra.mxu0 0
      %1112 = vmatprep.subr.bf16.mxu0 0
      %1113 = vmatpush1.bf16.msra.mxu0 0
      %1114 = vmatprep.subr.bf16.mxu0 %v1077
      %1115 = vmatpush1.bf16.msra.mxu0 %v1074
      %1116 = vmatprep.subr.bf16.mxu0 0
      %1117 = vmatpush2.bf16.msra.mxu0 0
      %1118 = vmatprep.subr.bf16.mxu0 0
      %1119 = vmatpush2.bf16.msra.mxu0 0
      %1120 = vmatprep.subr.bf16.mxu0 0
      %1121 = vmatpush2.bf16.msra.mxu0 0
      %1122 = vmatprep.subr.bf16.mxu0 0
      %1123 = vmatpush2.bf16.msra.mxu0 0
      %1124 = vmatprep.subr.bf16.mxu0 0
      %1125 = vmatpush2.bf16.msra.mxu0 0
      %1126 = vmatprep.subr.bf16.mxu0 0
      %1127 = vmatpush2.bf16.msra.mxu0 0
      %1128 = vmatprep.subr.bf16.mxu0 0
      %1129 = vmatpush2.bf16.msra.mxu0 0
      %1130 = vmatprep.subr.bf16.mxu0 0
      %1131 = vmatpush2.bf16.msra.mxu0 0
      %1132 = vmatprep.mubr.bf16.mxu0 0
      %1133 = vmatmul.mubr.bf16.gmra.mxu0 %v1071
      %v1134 = vpop.f32.mrf.mxu0
      %v1135 = vadd.f32 0.0, %v1134
      %v1136 = vpop.f32.mrf.mxu0
      %v1137 = vadd.f32 0.0, %v1136
      %v1138 = vpop.f32.mrf.mxu0
      %v1139 = vpop.f32.mrf.mxu0
      %1140 = vdwg.mxu0
      %1141 = vmatprep.subr.bf16.mxu0 0
      %1142 = vmatpush1.bf16.msra.mxu0 0
      %1143 = vmatprep.subr.bf16.mxu0 0
      %1144 = vmatpush1.bf16.msra.mxu0 0
      %1145 = vmatprep.subr.bf16.mxu0 0
      %1146 = vmatpush1.bf16.msra.mxu0 0
      %1147 = vmatprep.subr.bf16.mxu0 0
      %1148 = vmatpush1.bf16.msra.mxu0 0
      %1149 = vmatprep.subr.bf16.mxu0 0
      %1150 = vmatpush1.bf16.msra.mxu0 0
      %1151 = vmatprep.subr.bf16.mxu0 0
      %1152 = vmatpush1.bf16.msra.mxu0 0
      %1153 = vmatprep.subr.bf16.mxu0 0
      %1154 = vmatpush1.bf16.msra.mxu0 0
      %1155 = vmatprep.subr.bf16.mxu0 %v1083
      %1156 = vmatpush1.bf16.msra.mxu0 %v1080
      %1157 = vmatprep.subr.bf16.mxu0 0
      %1158 = vmatpush2.bf16.msra.mxu0 0
      %1159 = vmatprep.subr.bf16.mxu0 0
      %1160 = vmatpush2.bf16.msra.mxu0 0
      %1161 = vmatprep.subr.bf16.mxu0 0
      %1162 = vmatpush2.bf16.msra.mxu0 0
      %1163 = vmatprep.subr.bf16.mxu0 0
      %1164 = vmatpush2.bf16.msra.mxu0 0
      %1165 = vmatprep.subr.bf16.mxu0 0
      %1166 = vmatpush2.bf16.msra.mxu0 0
      %1167 = vmatprep.subr.bf16.mxu0 0
      %1168 = vmatpush2.bf16.msra.mxu0 0
      %1169 = vmatprep.subr.bf16.mxu0 0
      %1170 = vmatpush2.bf16.msra.mxu0 0
      %1171 = vmatprep.subr.bf16.mxu0 0
      %1172 = vmatpush2.bf16.msra.mxu0 0
      %1173 = vmatprep.mubr.bf16.mxu0 0
      %1174 = vmatmul.mubr.bf16.gmra.mxu0 %v1071
      %v1175 = vpop.f32.mrf.mxu0
      %v1176 = vadd.f32 0.0, %v1175
      %v1177 = vpop.f32.mrf.mxu0
      %v1178 = vadd.f32 0.0, %v1177
      %v1179 = vpop.f32.mrf.mxu0
      %v1180 = vpop.f32.mrf.mxu0
      %1181 = vdwg.mxu0
      %1182 = vmatprep.subr.bf16.mxu0 0
      %1183 = vmatpush1.bf16.msra.mxu0 0
      %1184 = vmatprep.subr.bf16.mxu0 0
      %1185 = vmatpush1.bf16.msra.mxu0 0
      %1186 = vmatprep.subr.bf16.mxu0 0
      %1187 = vmatpush1.bf16.msra.mxu0 0
      %1188 = vmatprep.subr.bf16.mxu0 0
      %1189 = vmatpush1.bf16.msra.mxu0 0
      %1190 = vmatprep.subr.bf16.mxu0 0
      %1191 = vmatpush1.bf16.msra.mxu0 0
      %1192 = vmatprep.subr.bf16.mxu0 0
      %1193 = vmatpush1.bf16.msra.mxu0 0
      %1194 = vmatprep.subr.bf16.mxu0 0
      %1195 = vmatpush1.bf16.msra.mxu0 0
      %1196 = vmatprep.subr.bf16.mxu0 %v1089
      %1197 = vmatpush1.bf16.msra.mxu0 %v1086
      %1198 = vmatprep.subr.bf16.mxu0 0
      %1199 = vmatpush2.bf16.msra.mxu0 0
      %1200 = vmatprep.subr.bf16.mxu0 0
      %1201 = vmatpush2.bf16.msra.mxu0 0
      %1202 = vmatprep.subr.bf16.mxu0 0
      %1203 = vmatpush2.bf16.msra.mxu0 0
      %1204 = vmatprep.subr.bf16.mxu0 0
      %1205 = vmatpush2.bf16.msra.mxu0 0
      %1206 = vmatprep.subr.bf16.mxu0 0
      %1207 = vmatpush2.bf16.msra.mxu0 0
      %1208 = vmatprep.subr.bf16.mxu0 0
      %1209 = vmatpush2.bf16.msra.mxu0 0
      %1210 = vmatprep.subr.bf16.mxu0 0
      %1211 = vmatpush2.bf16.msra.mxu0 0
      %1212 = vmatprep.subr.bf16.mxu0 0
      %1213 = vmatpush2.bf16.msra.mxu0 0
      %1214 = vmatprep.mubr.bf16.mxu0 0
      %1215 = vmatmul.mubr.bf16.gmra.mxu0 %v1071
      %v1216 = vpop.f32.mrf.mxu0
      %v1217 = vadd.f32 0.0, %v1216
      %v1218 = vpop.f32.mrf.mxu0
      %v1219 = vadd.f32 0.0, %v1218
      %v1220 = vpop.f32.mrf.mxu0
      %v1221 = vpop.f32.mrf.mxu0
      %1222 = vdwg.mxu0
      %1223 = vmatprep.subr.bf16.mxu0 0
      %1224 = vmatpush1.bf16.msra.mxu0 0
      %1225 = vmatprep.subr.bf16.mxu0 0
      %1226 = vmatpush1.bf16.msra.mxu0 0
      %1227 = vmatprep.subr.bf16.mxu0 0
      %1228 = vmatpush1.bf16.msra.mxu0 0
      %1229 = vmatprep.subr.bf16.mxu0 0
      %1230 = vmatpush1.bf16.msra.mxu0 0
      %1231 = vmatprep.subr.bf16.mxu0 0
      %1232 = vmatpush1.bf16.msra.mxu0 0
      %1233 = vmatprep.subr.bf16.mxu0 0
      %1234 = vmatpush1.bf16.msra.mxu0 0
      %1235 = vmatprep.subr.bf16.mxu0 0
      %1236 = vmatpush1.bf16.msra.mxu0 0
      %1237 = vmatprep.subr.bf16.mxu0 %v1095
      %1238 = vmatpush1.bf16.msra.mxu0 %v1092
      %1239 = vmatprep.subr.bf16.mxu0 0
      %1240 = vmatpush2.bf16.msra.mxu0 0
      %1241 = vmatprep.subr.bf16.mxu0 0
      %1242 = vmatpush2.bf16.msra.mxu0 0
      %1243 = vmatprep.subr.bf16.mxu0 0
      %1244 = vmatpush2.bf16.msra.mxu0 0
      %1245 = vmatprep.subr.bf16.mxu0 0
      %1246 = vmatpush2.bf16.msra.mxu0 0
      %1247 = vmatprep.subr.bf16.mxu0 0
      %1248 = vmatpush2.bf16.msra.mxu0 0
      %1249 = vmatprep.subr.bf16.mxu0 0
      %1250 = vmatpush2.bf16.msra.mxu0 0
      %1251 = vmatprep.subr.bf16.mxu0 0
      %1252 = vmatpush2.bf16.msra.mxu0 0
      %1253 = vmatprep.subr.bf16.mxu0 0
      %1254 = vmatpush2.bf16.msra.mxu0 0
      %1255 = vmatprep.mubr.bf16.mxu0 0
      %1256 = vmatmul.mubr.bf16.gmra.mxu0 %v1071
      %v1257 = vpop.f32.mrf.mxu0
      %v1258 = vadd.f32 0.0, %v1257
      %v1259 = vpop.f32.mrf.mxu0
      %v1260 = vadd.f32 0.0, %v1259
      %v1261 = vpop.f32.mrf.mxu0
      %v1262 = vpop.f32.mrf.mxu0
      %1263 = vdwg.mxu0
      %1264 = vmatprep.subr.bf16.mxu0 0
      %1265 = vmatpush1.bf16.msra.mxu0 0
      %1266 = vmatprep.subr.bf16.mxu0 0
      %1267 = vmatpush1.bf16.msra.mxu0 0
      %1268 = vmatprep.subr.bf16.mxu0 0
      %1269 = vmatpush1.bf16.msra.mxu0 0
      %1270 = vmatprep.subr.bf16.mxu0 0
      %1271 = vmatpush1.bf16.msra.mxu0 0
      %1272 = vmatprep.subr.bf16.mxu0 0
      %1273 = vmatpush1.bf16.msra.mxu0 0
      %1274 = vmatprep.subr.bf16.mxu0 0
      %1275 = vmatpush1.bf16.msra.mxu0 0
      %1276 = vmatprep.subr.bf16.mxu0 0
      %1277 = vmatpush1.bf16.msra.mxu0 0
      %1278 = vmatprep.subr.bf16.mxu0 0
      %1279 = vmatpush1.bf16.msra.mxu0 %v1098
      %1280 = vmatprep.subr.bf16.mxu0 0
      %1281 = vmatpush2.bf16.msra.mxu0 0
      %1282 = vmatprep.subr.bf16.mxu0 0
      %1283 = vmatpush2.bf16.msra.mxu0 0
      %1284 = vmatprep.subr.bf16.mxu0 0
      %1285 = vmatpush2.bf16.msra.mxu0 0
      %1286 = vmatprep.subr.bf16.mxu0 0
      %1287 = vmatpush2.bf16.msra.mxu0 0
      %1288 = vmatprep.subr.bf16.mxu0 0
      %1289 = vmatpush2.bf16.msra.mxu0 0
      %1290 = vmatprep.subr.bf16.mxu0 0
      %1291 = vmatpush2.bf16.msra.mxu0 0
      %1292 = vmatprep.subr.bf16.mxu0 0
      %1293 = vmatpush2.bf16.msra.mxu0 0
      %1294 = vmatprep.subr.bf16.mxu0 0
      %1295 = vmatpush2.bf16.msra.mxu0 0
      %1296 = vmatprep.mubr.bf16.mxu0 0
      %1297 = vmatmul.mubr.bf16.gmra.mxu0 %v1071
      %v1298 = vpop.f32.mrf.mxu0
      %v1299 = vadd.f32 0.0, %v1298
      %v1300 = vpop.f32.mrf.mxu0
      %v1301 = vpop.f32.mrf.mxu0
      %v1302 = vpop.f32.mrf.mxu0
      %1303 = vdwg.mxu0
      %v1304 = vadd.f32 %v1031, %v1135
      %v1305 = vadd.f32 %v1032, %v1137
      %v1306 = vadd.f32 %v1033, %v1176
      %v1307 = vadd.f32 %v1034, %v1178
      %v1308 = vadd.f32 %v1035, %v1217
      %v1309 = vadd.f32 %v1036, %v1219
      %v1310 = vadd.f32 %v1037, %v1258
      %v1311 = vadd.f32 %v1038, %v1260
      %v1312 = vadd.f32 %v1039, %v1299
      %1313 = vrot.lane.b32.xlu0 %v232, 94
      %v1314 = vpop.permute.xlu0 %1313
      %1315 = vrot.lane.b32.xlu0 %v240, 94
      %v1316 = vpop.permute.xlu0 %1315
      %1317 = vrot.lane.b32.xlu0 %v239, 94
      %v1318 = vpop.permute.xlu0 %1317
      %1319 = vrot.lane.b32.xlu0 %v241, 94
      %v1320 = vpop.permute.xlu0 %1319
      %1321 = vrot.lane.b32.xlu0 %v249, 94
      %v1322 = vpop.permute.xlu0 %1321
      %1323 = vrot.lane.b32.xlu0 %v257, 94
      %v1324 = vpop.permute.xlu0 %1323
      %1325 = vrot.lane.b32.xlu0 %v256, 94
      %v1326 = vpop.permute.xlu0 %1325
      %1327 = vrot.lane.b32.xlu0 %v258, 94
      %v1328 = vpop.permute.xlu0 %1327
      %1329 = vrot.lane.b32.xlu0 %v265, 94
      %v1330 = vpop.permute.xlu0 %1329
      %1331 = vrot.lane.b32.xlu0 %v266, 94
      %v1332 = vpop.permute.xlu0 %1331
      %vm1333 = vcmask 769024
      %v1334 = vsel %vm1333, %v1314, %v1316
      %v1335 = vsel %vm1333, %v1316, %v1318
      %v1336 = vsel %vm1333, %v1318, %v1320
      %v1337 = vsel %vm1333, %v1320, %v1322
      %v1338 = vsel %vm1333, %v1322, %v1324
      %v1339 = vsel %vm1333, %v1324, %v1326
      %v1340 = vsel %vm1333, %v1326, %v1328
      %v1341 = vsel %vm1333, %v1328, %v1330
      %v1342 = vsel %vm1333, %v1330, %v1332
      %v1344 = vsel %vm297, %v212, 0
      %v1347 = vsel %vm301, %v1334, 0
      %v1350 = vsel %vm301, %v1335, 0
      %v1353 = vsel %vm301, %v1336, 0
      %v1356 = vsel %vm301, %v1337, 0
      %v1359 = vsel %vm301, %v1338, 0
      %v1362 = vsel %vm301, %v1339, 0
      %v1365 = vsel %vm301, %v1340, 0
      %v1368 = vsel %vm301, %v1341, 0
      %v1371 = vsel %vm301, %v1342, 0
      %1373 = vmatprep.subr.bf16.mxu0 0
      %1374 = vmatpush1.bf16.msra.mxu0 0
      %1375 = vmatprep.subr.bf16.mxu0 0
      %1376 = vmatpush1.bf16.msra.mxu0 0
      %1377 = vmatprep.subr.bf16.mxu0 0
      %1378 = vmatpush1.bf16.msra.mxu0 0
      %1379 = vmatprep.subr.bf16.mxu0 0
      %1380 = vmatpush1.bf16.msra.mxu0 0
      %1381 = vmatprep.subr.bf16.mxu0 0
      %1382 = vmatpush1.bf16.msra.mxu0 0
      %1383 = vmatprep.subr.bf16.mxu0 0
      %1384 = vmatpush1.bf16.msra.mxu0 0
      %1385 = vmatprep.subr.bf16.mxu0 0
      %1386 = vmatpush1.bf16.msra.mxu0 0
      %1387 = vmatprep.subr.bf16.mxu0 %v1350
      %1388 = vmatpush1.bf16.msra.mxu0 %v1347
      %1389 = vmatprep.subr.bf16.mxu0 0
      %1390 = vmatpush2.bf16.msra.mxu0 0
      %1391 = vmatprep.subr.bf16.mxu0 0
      %1392 = vmatpush2.bf16.msra.mxu0 0
      %1393 = vmatprep.subr.bf16.mxu0 0
      %1394 = vmatpush2.bf16.msra.mxu0 0
      %1395 = vmatprep.subr.bf16.mxu0 0
      %1396 = vmatpush2.bf16.msra.mxu0 0
      %1397 = vmatprep.subr.bf16.mxu0 0
      %1398 = vmatpush2.bf16.msra.mxu0 0
      %1399 = vmatprep.subr.bf16.mxu0 0
      %1400 = vmatpush2.bf16.msra.mxu0 0
      %1401 = vmatprep.subr.bf16.mxu0 0
      %1402 = vmatpush2.bf16.msra.mxu0 0
      %1403 = vmatprep.subr.bf16.mxu0 0
      %1404 = vmatpush2.bf16.msra.mxu0 0
      %1405 = vmatprep.mubr.bf16.mxu0 0
      %1406 = vmatmul.mubr.bf16.gmra.mxu0 %v1344
      %v1407 = vpop.f32.mrf.mxu0
      %v1408 = vadd.f32 0.0, %v1407
      %v1409 = vpop.f32.mrf.mxu0
      %v1410 = vadd.f32 0.0, %v1409
      %v1411 = vpop.f32.mrf.mxu0
      %v1412 = vpop.f32.mrf.mxu0
      %1413 = vdwg.mxu0
      %1414 = vmatprep.subr.bf16.mxu0 0
      %1415 = vmatpush1.bf16.msra.mxu0 0
      %1416 = vmatprep.subr.bf16.mxu0 0
      %1417 = vmatpush1.bf16.msra.mxu0 0
      %1418 = vmatprep.subr.bf16.mxu0 0
      %1419 = vmatpush1.bf16.msra.mxu0 0
      %1420 = vmatprep.subr.bf16.mxu0 0
      %1421 = vmatpush1.bf16.msra.mxu0 0
      %1422 = vmatprep.subr.bf16.mxu0 0
      %1423 = vmatpush1.bf16.msra.mxu0 0
      %1424 = vmatprep.subr.bf16.mxu0 0
      %1425 = vmatpush1.bf16.msra.mxu0 0
      %1426 = vmatprep.subr.bf16.mxu0 0
      %1427 = vmatpush1.bf16.msra.mxu0 0
      %1428 = vmatprep.subr.bf16.mxu0 %v1356
      %1429 = vmatpush1.bf16.msra.mxu0 %v1353
      %1430 = vmatprep.subr.bf16.mxu0 0
      %1431 = vmatpush2.bf16.msra.mxu0 0
      %1432 = vmatprep.subr.bf16.mxu0 0
      %1433 = vmatpush2.bf16.msra.mxu0 0
      %1434 = vmatprep.subr.bf16.mxu0 0
      %1435 = vmatpush2.bf16.msra.mxu0 0
      %1436 = vmatprep.subr.bf16.mxu0 0
      %1437 = vmatpush2.bf16.msra.mxu0 0
      %1438 = vmatprep.subr.bf16.mxu0 0
      %1439 = vmatpush2.bf16.msra.mxu0 0
      %1440 = vmatprep.subr.bf16.mxu0 0
      %1441 = vmatpush2.bf16.msra.mxu0 0
      %1442 = vmatprep.subr.bf16.mxu0 0
      %1443 = vmatpush2.bf16.msra.mxu0 0
      %1444 = vmatprep.subr.bf16.mxu0 0
      %1445 = vmatpush2.bf16.msra.mxu0 0
      %1446 = vmatprep.mubr.bf16.mxu0 0
      %1447 = vmatmul.mubr.bf16.gmra.mxu0 %v1344
      %v1448 = vpop.f32.mrf.mxu0
      %v1449 = vadd.f32 0.0, %v1448
      %v1450 = vpop.f32.mrf.mxu0
      %v1451 = vadd.f32 0.0, %v1450
      %v1452 = vpop.f32.mrf.mxu0
      %v1453 = vpop.f32.mrf.mxu0
      %1454 = vdwg.mxu0
      %1455 = vmatprep.subr.bf16.mxu0 0
      %1456 = vmatpush1.bf16.msra.mxu0 0
      %1457 = vmatprep.subr.bf16.mxu0 0
      %1458 = vmatpush1.bf16.msra.mxu0 0
      %1459 = vmatprep.subr.bf16.mxu0 0
      %1460 = vmatpush1.bf16.msra.mxu0 0
      %1461 = vmatprep.subr.bf16.mxu0 0
      %1462 = vmatpush1.bf16.msra.mxu0 0
      %1463 = vmatprep.subr.bf16.mxu0 0
      %1464 = vmatpush1.bf16.msra.mxu0 0
      %1465 = vmatprep.subr.bf16.mxu0 0
      %1466 = vmatpush1.bf16.msra.mxu0 0
      %1467 = vmatprep.subr.bf16.mxu0 0
      %1468 = vmatpush1.bf16.msra.mxu0 0
      %1469 = vmatprep.subr.bf16.mxu0 %v1362
      %1470 = vmatpush1.bf16.msra.mxu0 %v1359
      %1471 = vmatprep.subr.bf16.mxu0 0
      %1472 = vmatpush2.bf16.msra.mxu0 0
      %1473 = vmatprep.subr.bf16.mxu0 0
      %1474 = vmatpush2.bf16.msra.mxu0 0
      %1475 = vmatprep.subr.bf16.mxu0 0
      %1476 = vmatpush2.bf16.msra.mxu0 0
      %1477 = vmatprep.subr.bf16.mxu0 0
      %1478 = vmatpush2.bf16.msra.mxu0 0
      %1479 = vmatprep.subr.bf16.mxu0 0
      %1480 = vmatpush2.bf16.msra.mxu0 0
      %1481 = vmatprep.subr.bf16.mxu0 0
      %1482 = vmatpush2.bf16.msra.mxu0 0
      %1483 = vmatprep.subr.bf16.mxu0 0
      %1484 = vmatpush2.bf16.msra.mxu0 0
      %1485 = vmatprep.subr.bf16.mxu0 0
      %1486 = vmatpush2.bf16.msra.mxu0 0
      %1487 = vmatprep.mubr.bf16.mxu0 0
      %1488 = vmatmul.mubr.bf16.gmra.mxu0 %v1344
      %v1489 = vpop.f32.mrf.mxu0
      %v1490 = vadd.f32 0.0, %v1489
      %v1491 = vpop.f32.mrf.mxu0
      %v1492 = vadd.f32 0.0, %v1491
      %v1493 = vpop.f32.mrf.mxu0
      %v1494 = vpop.f32.mrf.mxu0
      %1495 = vdwg.mxu0
      %1496 = vmatprep.subr.bf16.mxu0 0
      %1497 = vmatpush1.bf16.msra.mxu0 0
      %1498 = vmatprep.subr.bf16.mxu0 0
      %1499 = vmatpush1.bf16.msra.mxu0 0
      %1500 = vmatprep.subr.bf16.mxu0 0
      %1501 = vmatpush1.bf16.msra.mxu0 0
      %1502 = vmatprep.subr.bf16.mxu0 0
      %1503 = vmatpush1.bf16.msra.mxu0 0
      %1504 = vmatprep.subr.bf16.mxu0 0
      %1505 = vmatpush1.bf16.msra.mxu0 0
      %1506 = vmatprep.subr.bf16.mxu0 0
      %1507 = vmatpush1.bf16.msra.mxu0 0
      %1508 = vmatprep.subr.bf16.mxu0 0
      %1509 = vmatpush1.bf16.msra.mxu0 0
      %1510 = vmatprep.subr.bf16.mxu0 %v1368
      %1511 = vmatpush1.bf16.msra.mxu0 %v1365
      %1512 = vmatprep.subr.bf16.mxu0 0
      %1513 = vmatpush2.bf16.msra.mxu0 0
      %1514 = vmatprep.subr.bf16.mxu0 0
      %1515 = vmatpush2.bf16.msra.mxu0 0
      %1516 = vmatprep.subr.bf16.mxu0 0
      %1517 = vmatpush2.bf16.msra.mxu0 0
      %1518 = vmatprep.subr.bf16.mxu0 0
      %1519 = vmatpush2.bf16.msra.mxu0 0
      %1520 = vmatprep.subr.bf16.mxu0 0
      %1521 = vmatpush2.bf16.msra.mxu0 0
      %1522 = vmatprep.subr.bf16.mxu0 0
      %1523 = vmatpush2.bf16.msra.mxu0 0
      %1524 = vmatprep.subr.bf16.mxu0 0
      %1525 = vmatpush2.bf16.msra.mxu0 0
      %1526 = vmatprep.subr.bf16.mxu0 0
      %1527 = vmatpush2.bf16.msra.mxu0 0
      %1528 = vmatprep.mubr.bf16.mxu0 0
      %1529 = vmatmul.mubr.bf16.gmra.mxu0 %v1344
      %v1530 = vpop.f32.mrf.mxu0
      %v1531 = vadd.f32 0.0, %v1530
      %v1532 = vpop.f32.mrf.mxu0
      %v1533 = vadd.f32 0.0, %v1532
      %v1534 = vpop.f32.mrf.mxu0
      %v1535 = vpop.f32.mrf.mxu0
      %1536 = vdwg.mxu0
      %1537 = vmatprep.subr.bf16.mxu0 0
      %1538 = vmatpush1.bf16.msra.mxu0 0
      %1539 = vmatprep.subr.bf16.mxu0 0
      %1540 = vmatpush1.bf16.msra.mxu0 0
      %1541 = vmatprep.subr.bf16.mxu0 0
      %1542 = vmatpush1.bf16.msra.mxu0 0
      %1543 = vmatprep.subr.bf16.mxu0 0
      %1544 = vmatpush1.bf16.msra.mxu0 0
      %1545 = vmatprep.subr.bf16.mxu0 0
      %1546 = vmatpush1.bf16.msra.mxu0 0
      %1547 = vmatprep.subr.bf16.mxu0 0
      %1548 = vmatpush1.bf16.msra.mxu0 0
      %1549 = vmatprep.subr.bf16.mxu0 0
      %1550 = vmatpush1.bf16.msra.mxu0 0
      %1551 = vmatprep.subr.bf16.mxu0 0
      %1552 = vmatpush1.bf16.msra.mxu0 %v1371
      %1553 = vmatprep.subr.bf16.mxu0 0
      %1554 = vmatpush2.bf16.msra.mxu0 0
      %1555 = vmatprep.subr.bf16.mxu0 0
      %1556 = vmatpush2.bf16.msra.mxu0 0
      %1557 = vmatprep.subr.bf16.mxu0 0
      %1558 = vmatpush2.bf16.msra.mxu0 0
      %1559 = vmatprep.subr.bf16.mxu0 0
      %1560 = vmatpush2.bf16.msra.mxu0 0
      %1561 = vmatprep.subr.bf16.mxu0 0
      %1562 = vmatpush2.bf16.msra.mxu0 0
      %1563 = vmatprep.subr.bf16.mxu0 0
      %1564 = vmatpush2.bf16.msra.mxu0 0
      %1565 = vmatprep.subr.bf16.mxu0 0
      %1566 = vmatpush2.bf16.msra.mxu0 0
      %1567 = vmatprep.subr.bf16.mxu0 0
      %1568 = vmatpush2.bf16.msra.mxu0 0
      %1569 = vmatprep.mubr.bf16.mxu0 0
      %1570 = vmatmul.mubr.bf16.gmra.mxu0 %v1344
      %v1571 = vpop.f32.mrf.mxu0
      %v1572 = vadd.f32 0.0, %v1571
      %v1573 = vpop.f32.mrf.mxu0
      %v1574 = vpop.f32.mrf.mxu0
      %v1575 = vpop.f32.mrf.mxu0
      %1576 = vdwg.mxu0
      %v1577 = vadd.f32 %v1304, %v1408
      %v1578 = vadd.f32 %v1305, %v1410
      %v1579 = vadd.f32 %v1306, %v1449
      %v1580 = vadd.f32 %v1307, %v1451
      %v1581 = vadd.f32 %v1308, %v1490
      %v1582 = vadd.f32 %v1309, %v1492
      %v1583 = vadd.f32 %v1310, %v1531
      %v1584 = vadd.f32 %v1311, %v1533
      %v1585 = vadd.f32 %v1312, %v1572
      %1586 = vrot.lane.b32.xlu0 %v232, 93
      %v1587 = vpop.permute.xlu0 %1586
      %1588 = vrot.lane.b32.xlu0 %v240, 93
      %v1589 = vpop.permute.xlu0 %1588
      %1590 = vrot.lane.b32.xlu0 %v239, 93
      %v1591 = vpop.permute.xlu0 %1590
      %1592 = vrot.lane.b32.xlu0 %v241, 93
      %v1593 = vpop.permute.xlu0 %1592
      %1594 = vrot.lane.b32.xlu0 %v249, 93
      %v1595 = vpop.permute.xlu0 %1594
      %1596 = vrot.lane.b32.xlu0 %v257, 93
      %v1597 = vpop.permute.xlu0 %1596
      %1598 = vrot.lane.b32.xlu0 %v256, 93
      %v1599 = vpop.permute.xlu0 %1598
      %1600 = vrot.lane.b32.xlu0 %v258, 93
      %v1601 = vpop.permute.xlu0 %1600
      %1602 = vrot.lane.b32.xlu0 %v265, 93
      %v1603 = vpop.permute.xlu0 %1602
      %1604 = vrot.lane.b32.xlu0 %v266, 93
      %v1605 = vpop.permute.xlu0 %1604
      %vm1606 = vcmask 760832
      %v1607 = vsel %vm1606, %v1587, %v1589
      %v1608 = vsel %vm1606, %v1589, %v1591
      %v1609 = vsel %vm1606, %v1591, %v1593
      %v1610 = vsel %vm1606, %v1593, %v1595
      %v1611 = vsel %vm1606, %v1595, %v1597
      %v1612 = vsel %vm1606, %v1597, %v1599
      %v1613 = vsel %vm1606, %v1599, %v1601
      %v1614 = vsel %vm1606, %v1601, %v1603
      %v1615 = vsel %vm1606, %v1603, %v1605
      %v1617 = vsel %vm297, %v213, 0
      %v1620 = vsel %vm301, %v1607, 0
      %v1623 = vsel %vm301, %v1608, 0
      %v1626 = vsel %vm301, %v1609, 0
      %v1629 = vsel %vm301, %v1610, 0
      %v1632 = vsel %vm301, %v1611, 0
      %v1635 = vsel %vm301, %v1612, 0
      %v1638 = vsel %vm301, %v1613, 0
      %v1641 = vsel %vm301, %v1614, 0
      %v1644 = vsel %vm301, %v1615, 0
      %1646 = vmatprep.subr.bf16.mxu0 0
      %1647 = vmatpush1.bf16.msra.mxu0 0
      %1648 = vmatprep.subr.bf16.mxu0 0
      %1649 = vmatpush1.bf16.msra.mxu0 0
      %1650 = vmatprep.subr.bf16.mxu0 0
      %1651 = vmatpush1.bf16.msra.mxu0 0
      %1652 = vmatprep.subr.bf16.mxu0 0
      %1653 = vmatpush1.bf16.msra.mxu0 0
      %1654 = vmatprep.subr.bf16.mxu0 0
      %1655 = vmatpush1.bf16.msra.mxu0 0
      %1656 = vmatprep.subr.bf16.mxu0 0
      %1657 = vmatpush1.bf16.msra.mxu0 0
      %1658 = vmatprep.subr.bf16.mxu0 0
      %1659 = vmatpush1.bf16.msra.mxu0 0
      %1660 = vmatprep.subr.bf16.mxu0 %v1623
      %1661 = vmatpush1.bf16.msra.mxu0 %v1620
      %1662 = vmatprep.subr.bf16.mxu0 0
      %1663 = vmatpush2.bf16.msra.mxu0 0
      %1664 = vmatprep.subr.bf16.mxu0 0
      %1665 = vmatpush2.bf16.msra.mxu0 0
      %1666 = vmatprep.subr.bf16.mxu0 0
      %1667 = vmatpush2.bf16.msra.mxu0 0
      %1668 = vmatprep.subr.bf16.mxu0 0
      %1669 = vmatpush2.bf16.msra.mxu0 0
      %1670 = vmatprep.subr.bf16.mxu0 0
      %1671 = vmatpush2.bf16.msra.mxu0 0
      %1672 = vmatprep.subr.bf16.mxu0 0
      %1673 = vmatpush2.bf16.msra.mxu0 0
      %1674 = vmatprep.subr.bf16.mxu0 0
      %1675 = vmatpush2.bf16.msra.mxu0 0
      %1676 = vmatprep.subr.bf16.mxu0 0
      %1677 = vmatpush2.bf16.msra.mxu0 0
      %1678 = vmatprep.mubr.bf16.mxu0 0
      %1679 = vmatmul.mubr.bf16.gmra.mxu0 %v1617
      %v1680 = vpop.f32.mrf.mxu0
      %v1681 = vadd.f32 0.0, %v1680
      %v1682 = vpop.f32.mrf.mxu0
      %v1683 = vadd.f32 0.0, %v1682
      %v1684 = vpop.f32.mrf.mxu0
      %v1685 = vpop.f32.mrf.mxu0
      %1686 = vdwg.mxu0
      %1687 = vmatprep.subr.bf16.mxu0 0
      %1688 = vmatpush1.bf16.msra.mxu0 0
      %1689 = vmatprep.subr.bf16.mxu0 0
      %1690 = vmatpush1.bf16.msra.mxu0 0
      %1691 = vmatprep.subr.bf16.mxu0 0
      %1692 = vmatpush1.bf16.msra.mxu0 0
      %1693 = vmatprep.subr.bf16.mxu0 0
      %1694 = vmatpush1.bf16.msra.mxu0 0
      %1695 = vmatprep.subr.bf16.mxu0 0
      %1696 = vmatpush1.bf16.msra.mxu0 0
      %1697 = vmatprep.subr.bf16.mxu0 0
      %1698 = vmatpush1.bf16.msra.mxu0 0
      %1699 = vmatprep.subr.bf16.mxu0 0
      %1700 = vmatpush1.bf16.msra.mxu0 0
      %1701 = vmatprep.subr.bf16.mxu0 %v1629
      %1702 = vmatpush1.bf16.msra.mxu0 %v1626
      %1703 = vmatprep.subr.bf16.mxu0 0
      %1704 = vmatpush2.bf16.msra.mxu0 0
      %1705 = vmatprep.subr.bf16.mxu0 0
      %1706 = vmatpush2.bf16.msra.mxu0 0
      %1707 = vmatprep.subr.bf16.mxu0 0
      %1708 = vmatpush2.bf16.msra.mxu0 0
      %1709 = vmatprep.subr.bf16.mxu0 0
      %1710 = vmatpush2.bf16.msra.mxu0 0
      %1711 = vmatprep.subr.bf16.mxu0 0
      %1712 = vmatpush2.bf16.msra.mxu0 0
      %1713 = vmatprep.subr.bf16.mxu0 0
      %1714 = vmatpush2.bf16.msra.mxu0 0
      %1715 = vmatprep.subr.bf16.mxu0 0
      %1716 = vmatpush2.bf16.msra.mxu0 0
      %1717 = vmatprep.subr.bf16.mxu0 0
      %1718 = vmatpush2.bf16.msra.mxu0 0
      %1719 = vmatprep.mubr.bf16.mxu0 0
      %1720 = vmatmul.mubr.bf16.gmra.mxu0 %v1617
      %v1721 = vpop.f32.mrf.mxu0
      %v1722 = vadd.f32 0.0, %v1721
      %v1723 = vpop.f32.mrf.mxu0
      %v1724 = vadd.f32 0.0, %v1723
      %v1725 = vpop.f32.mrf.mxu0
      %v1726 = vpop.f32.mrf.mxu0
      %1727 = vdwg.mxu0
      %1728 = vmatprep.subr.bf16.mxu0 0
      %1729 = vmatpush1.bf16.msra.mxu0 0
      %1730 = vmatprep.subr.bf16.mxu0 0
      %1731 = vmatpush1.bf16.msra.mxu0 0
      %1732 = vmatprep.subr.bf16.mxu0 0
      %1733 = vmatpush1.bf16.msra.mxu0 0
      %1734 = vmatprep.subr.bf16.mxu0 0
      %1735 = vmatpush1.bf16.msra.mxu0 0
      %1736 = vmatprep.subr.bf16.mxu0 0
      %1737 = vmatpush1.bf16.msra.mxu0 0
      %1738 = vmatprep.subr.bf16.mxu0 0
      %1739 = vmatpush1.bf16.msra.mxu0 0
      %1740 = vmatprep.subr.bf16.mxu0 0
      %1741 = vmatpush1.bf16.msra.mxu0 0
      %1742 = vmatprep.subr.bf16.mxu0 %v1635
      %1743 = vmatpush1.bf16.msra.mxu0 %v1632
      %1744 = vmatprep.subr.bf16.mxu0 0
      %1745 = vmatpush2.bf16.msra.mxu0 0
      %1746 = vmatprep.subr.bf16.mxu0 0
      %1747 = vmatpush2.bf16.msra.mxu0 0
      %1748 = vmatprep.subr.bf16.mxu0 0
      %1749 = vmatpush2.bf16.msra.mxu0 0
      %1750 = vmatprep.subr.bf16.mxu0 0
      %1751 = vmatpush2.bf16.msra.mxu0 0
      %1752 = vmatprep.subr.bf16.mxu0 0
      %1753 = vmatpush2.bf16.msra.mxu0 0
      %1754 = vmatprep.subr.bf16.mxu0 0
      %1755 = vmatpush2.bf16.msra.mxu0 0
      %1756 = vmatprep.subr.bf16.mxu0 0
      %1757 = vmatpush2.bf16.msra.mxu0 0
      %1758 = vmatprep.subr.bf16.mxu0 0
      %1759 = vmatpush2.bf16.msra.mxu0 0
      %1760 = vmatprep.mubr.bf16.mxu0 0
      %1761 = vmatmul.mubr.bf16.gmra.mxu0 %v1617
      %v1762 = vpop.f32.mrf.mxu0
      %v1763 = vadd.f32 0.0, %v1762
      %v1764 = vpop.f32.mrf.mxu0
      %v1765 = vadd.f32 0.0, %v1764
      %v1766 = vpop.f32.mrf.mxu0
      %v1767 = vpop.f32.mrf.mxu0
      %1768 = vdwg.mxu0
      %1769 = vmatprep.subr.bf16.mxu0 0
      %1770 = vmatpush1.bf16.msra.mxu0 0
      %1771 = vmatprep.subr.bf16.mxu0 0
      %1772 = vmatpush1.bf16.msra.mxu0 0
      %1773 = vmatprep.subr.bf16.mxu0 0
      %1774 = vmatpush1.bf16.msra.mxu0 0
      %1775 = vmatprep.subr.bf16.mxu0 0
      %1776 = vmatpush1.bf16.msra.mxu0 0
      %1777 = vmatprep.subr.bf16.mxu0 0
      %1778 = vmatpush1.bf16.msra.mxu0 0
      %1779 = vmatprep.subr.bf16.mxu0 0
      %1780 = vmatpush1.bf16.msra.mxu0 0
      %1781 = vmatprep.subr.bf16.mxu0 0
      %1782 = vmatpush1.bf16.msra.mxu0 0
      %1783 = vmatprep.subr.bf16.mxu0 %v1641
      %1784 = vmatpush1.bf16.msra.mxu0 %v1638
      %1785 = vmatprep.subr.bf16.mxu0 0
      %1786 = vmatpush2.bf16.msra.mxu0 0
      %1787 = vmatprep.subr.bf16.mxu0 0
      %1788 = vmatpush2.bf16.msra.mxu0 0
      %1789 = vmatprep.subr.bf16.mxu0 0
      %1790 = vmatpush2.bf16.msra.mxu0 0
      %1791 = vmatprep.subr.bf16.mxu0 0
      %1792 = vmatpush2.bf16.msra.mxu0 0
      %1793 = vmatprep.subr.bf16.mxu0 0
      %1794 = vmatpush2.bf16.msra.mxu0 0
      %1795 = vmatprep.subr.bf16.mxu0 0
      %1796 = vmatpush2.bf16.msra.mxu0 0
      %1797 = vmatprep.subr.bf16.mxu0 0
      %1798 = vmatpush2.bf16.msra.mxu0 0
      %1799 = vmatprep.subr.bf16.mxu0 0
      %1800 = vmatpush2.bf16.msra.mxu0 0
      %1801 = vmatprep.mubr.bf16.mxu0 0
      %1802 = vmatmul.mubr.bf16.gmra.mxu0 %v1617
      %v1803 = vpop.f32.mrf.mxu0
      %v1804 = vadd.f32 0.0, %v1803
      %v1805 = vpop.f32.mrf.mxu0
      %v1806 = vadd.f32 0.0, %v1805
      %v1807 = vpop.f32.mrf.mxu0
      %v1808 = vpop.f32.mrf.mxu0
      %1809 = vdwg.mxu0
      %1810 = vmatprep.subr.bf16.mxu0 0
      %1811 = vmatpush1.bf16.msra.mxu0 0
      %1812 = vmatprep.subr.bf16.mxu0 0
      %1813 = vmatpush1.bf16.msra.mxu0 0
      %1814 = vmatprep.subr.bf16.mxu0 0
      %1815 = vmatpush1.bf16.msra.mxu0 0
      %1816 = vmatprep.subr.bf16.mxu0 0
      %1817 = vmatpush1.bf16.msra.mxu0 0
      %1818 = vmatprep.subr.bf16.mxu0 0
      %1819 = vmatpush1.bf16.msra.mxu0 0
      %1820 = vmatprep.subr.bf16.mxu0 0
      %1821 = vmatpush1.bf16.msra.mxu0 0
      %1822 = vmatprep.subr.bf16.mxu0 0
      %1823 = vmatpush1.bf16.msra.mxu0 0
      %1824 = vmatprep.subr.bf16.mxu0 0
      %1825 = vmatpush1.bf16.msra.mxu0 %v1644
      %1826 = vmatprep.subr.bf16.mxu0 0
      %1827 = vmatpush2.bf16.msra.mxu0 0
      %1828 = vmatprep.subr.bf16.mxu0 0
      %1829 = vmatpush2.bf16.msra.mxu0 0
      %1830 = vmatprep.subr.bf16.mxu0 0
      %1831 = vmatpush2.bf16.msra.mxu0 0
      %1832 = vmatprep.subr.bf16.mxu0 0
      %1833 = vmatpush2.bf16.msra.mxu0 0
      %1834 = vmatprep.subr.bf16.mxu0 0
      %1835 = vmatpush2.bf16.msra.mxu0 0
      %1836 = vmatprep.subr.bf16.mxu0 0
      %1837 = vmatpush2.bf16.msra.mxu0 0
      %1838 = vmatprep.subr.bf16.mxu0 0
      %1839 = vmatpush2.bf16.msra.mxu0 0
      %1840 = vmatprep.subr.bf16.mxu0 0
      %1841 = vmatpush2.bf16.msra.mxu0 0
      %1842 = vmatprep.mubr.bf16.mxu0 0
      %1843 = vmatmul.mubr.bf16.gmra.mxu0 %v1617
      %v1844 = vpop.f32.mrf.mxu0
      %v1845 = vadd.f32 0.0, %v1844
      %v1846 = vpop.f32.mrf.mxu0
      %v1847 = vpop.f32.mrf.mxu0
      %v1848 = vpop.f32.mrf.mxu0
      %1849 = vdwg.mxu0
      %v1850 = vadd.f32 %v1577, %v1681
      %v1851 = vadd.f32 %v1578, %v1683
      %v1852 = vadd.f32 %v1579, %v1722
      %v1853 = vadd.f32 %v1580, %v1724
      %v1854 = vadd.f32 %v1581, %v1763
      %v1855 = vadd.f32 %v1582, %v1765
      %v1856 = vadd.f32 %v1583, %v1804
      %v1857 = vadd.f32 %v1584, %v1806
      %v1858 = vadd.f32 %v1585, %v1845
      %1859 = vrot.lane.b32.xlu0 %v232, 62
      %v1860 = vpop.permute.xlu0 %1859
      %1861 = vrot.lane.b32.xlu0 %v240, 62
      %v1862 = vpop.permute.xlu0 %1861
      %1863 = vrot.lane.b32.xlu0 %v239, 62
      %v1864 = vpop.permute.xlu0 %1863
      %1865 = vrot.lane.b32.xlu0 %v241, 62
      %v1866 = vpop.permute.xlu0 %1865
      %1867 = vrot.lane.b32.xlu0 %v249, 62
      %v1868 = vpop.permute.xlu0 %1867
      %1869 = vrot.lane.b32.xlu0 %v257, 62
      %v1870 = vpop.permute.xlu0 %1869
      %1871 = vrot.lane.b32.xlu0 %v256, 62
      %v1872 = vpop.permute.xlu0 %1871
      %1873 = vrot.lane.b32.xlu0 %v258, 62
      %v1874 = vpop.permute.xlu0 %1873
      %1875 = vrot.lane.b32.xlu0 %v265, 62
      %v1876 = vpop.permute.xlu0 %1875
      %1877 = vrot.lane.b32.xlu0 %v266, 62
      %v1878 = vpop.permute.xlu0 %1877
      %vm1879 = vcmask 506880
      %v1880 = vsel %vm1879, %v1860, %v1862
      %v1881 = vsel %vm1879, %v1862, %v1864
      %v1882 = vsel %vm1879, %v1864, %v1866
      %v1883 = vsel %vm1879, %v1866, %v1868
      %v1884 = vsel %vm1879, %v1868, %v1870
      %v1885 = vsel %vm1879, %v1870, %v1872
      %v1886 = vsel %vm1879, %v1872, %v1874
      %v1887 = vsel %vm1879, %v1874, %v1876
      %v1888 = vsel %vm1879, %v1876, %v1878
      %v1890 = vsel %vm297, %v214, 0
      %v1893 = vsel %vm301, %v1880, 0
      %v1896 = vsel %vm301, %v1881, 0
      %v1899 = vsel %vm301, %v1882, 0
      %v1902 = vsel %vm301, %v1883, 0
      %v1905 = vsel %vm301, %v1884, 0
      %v1908 = vsel %vm301, %v1885, 0
      %v1911 = vsel %vm301, %v1886, 0
      %v1914 = vsel %vm301, %v1887, 0
      %v1917 = vsel %vm301, %v1888, 0
      %1919 = vmatprep.subr.bf16.mxu0 0
      %1920 = vmatpush1.bf16.msra.mxu0 0
      %1921 = vmatprep.subr.bf16.mxu0 0
      %1922 = vmatpush1.bf16.msra.mxu0 0
      %1923 = vmatprep.subr.bf16.mxu0 0
      %1924 = vmatpush1.bf16.msra.mxu0 0
      %1925 = vmatprep.subr.bf16.mxu0 0
      %1926 = vmatpush1.bf16.msra.mxu0 0
      %1927 = vmatprep.subr.bf16.mxu0 0
      %1928 = vmatpush1.bf16.msra.mxu0 0
      %1929 = vmatprep.subr.bf16.mxu0 0
      %1930 = vmatpush1.bf16.msra.mxu0 0
      %1931 = vmatprep.subr.bf16.mxu0 0
      %1932 = vmatpush1.bf16.msra.mxu0 0
      %1933 = vmatprep.subr.bf16.mxu0 %v1896
      %1934 = vmatpush1.bf16.msra.mxu0 %v1893
      %1935 = vmatprep.subr.bf16.mxu0 0
      %1936 = vmatpush2.bf16.msra.mxu0 0
      %1937 = vmatprep.subr.bf16.mxu0 0
      %1938 = vmatpush2.bf16.msra.mxu0 0
      %1939 = vmatprep.subr.bf16.mxu0 0
      %1940 = vmatpush2.bf16.msra.mxu0 0
      %1941 = vmatprep.subr.bf16.mxu0 0
      %1942 = vmatpush2.bf16.msra.mxu0 0
      %1943 = vmatprep.subr.bf16.mxu0 0
      %1944 = vmatpush2.bf16.msra.mxu0 0
      %1945 = vmatprep.subr.bf16.mxu0 0
      %1946 = vmatpush2.bf16.msra.mxu0 0
      %1947 = vmatprep.subr.bf16.mxu0 0
      %1948 = vmatpush2.bf16.msra.mxu0 0
      %1949 = vmatprep.subr.bf16.mxu0 0
      %1950 = vmatpush2.bf16.msra.mxu0 0
      %1951 = vmatprep.mubr.bf16.mxu0 0
      %1952 = vmatmul.mubr.bf16.gmra.mxu0 %v1890
      %v1953 = vpop.f32.mrf.mxu0
      %v1954 = vadd.f32 0.0, %v1953
      %v1955 = vpop.f32.mrf.mxu0
      %v1956 = vadd.f32 0.0, %v1955
      %v1957 = vpop.f32.mrf.mxu0
      %v1958 = vpop.f32.mrf.mxu0
      %1959 = vdwg.mxu0
      %1960 = vmatprep.subr.bf16.mxu0 0
      %1961 = vmatpush1.bf16.msra.mxu0 0
      %1962 = vmatprep.subr.bf16.mxu0 0
      %1963 = vmatpush1.bf16.msra.mxu0 0
      %1964 = vmatprep.subr.bf16.mxu0 0
      %1965 = vmatpush1.bf16.msra.mxu0 0
      %1966 = vmatprep.subr.bf16.mxu0 0
      %1967 = vmatpush1.bf16.msra.mxu0 0
      %1968 = vmatprep.subr.bf16.mxu0 0
      %1969 = vmatpush1.bf16.msra.mxu0 0
      %1970 = vmatprep.subr.bf16.mxu0 0
      %1971 = vmatpush1.bf16.msra.mxu0 0
      %1972 = vmatprep.subr.bf16.mxu0 0
      %1973 = vmatpush1.bf16.msra.mxu0 0
      %1974 = vmatprep.subr.bf16.mxu0 %v1902
      %1975 = vmatpush1.bf16.msra.mxu0 %v1899
      %1976 = vmatprep.subr.bf16.mxu0 0
      %1977 = vmatpush2.bf16.msra.mxu0 0
      %1978 = vmatprep.subr.bf16.mxu0 0
      %1979 = vmatpush2.bf16.msra.mxu0 0
      %1980 = vmatprep.subr.bf16.mxu0 0
      %1981 = vmatpush2.bf16.msra.mxu0 0
      %1982 = vmatprep.subr.bf16.mxu0 0
      %1983 = vmatpush2.bf16.msra.mxu0 0
      %1984 = vmatprep.subr.bf16.mxu0 0
      %1985 = vmatpush2.bf16.msra.mxu0 0
      %1986 = vmatprep.subr.bf16.mxu0 0
      %1987 = vmatpush2.bf16.msra.mxu0 0
      %1988 = vmatprep.subr.bf16.mxu0 0
      %1989 = vmatpush2.bf16.msra.mxu0 0
      %1990 = vmatprep.subr.bf16.mxu0 0
      %1991 = vmatpush2.bf16.msra.mxu0 0
      %1992 = vmatprep.mubr.bf16.mxu0 0
      %1993 = vmatmul.mubr.bf16.gmra.mxu0 %v1890
      %v1994 = vpop.f32.mrf.mxu0
      %v1995 = vadd.f32 0.0, %v1994
      %v1996 = vpop.f32.mrf.mxu0
      %v1997 = vadd.f32 0.0, %v1996
      %v1998 = vpop.f32.mrf.mxu0
      %v1999 = vpop.f32.mrf.mxu0
      %2000 = vdwg.mxu0
      %2001 = vmatprep.subr.bf16.mxu0 0
      %2002 = vmatpush1.bf16.msra.mxu0 0
      %2003 = vmatprep.subr.bf16.mxu0 0
      %2004 = vmatpush1.bf16.msra.mxu0 0
      %2005 = vmatprep.subr.bf16.mxu0 0
      %2006 = vmatpush1.bf16.msra.mxu0 0
      %2007 = vmatprep.subr.bf16.mxu0 0
      %2008 = vmatpush1.bf16.msra.mxu0 0
      %2009 = vmatprep.subr.bf16.mxu0 0
      %2010 = vmatpush1.bf16.msra.mxu0 0
      %2011 = vmatprep.subr.bf16.mxu0 0
      %2012 = vmatpush1.bf16.msra.mxu0 0
      %2013 = vmatprep.subr.bf16.mxu0 0
      %2014 = vmatpush1.bf16.msra.mxu0 0
      %2015 = vmatprep.subr.bf16.mxu0 %v1908
      %2016 = vmatpush1.bf16.msra.mxu0 %v1905
      %2017 = vmatprep.subr.bf16.mxu0 0
      %2018 = vmatpush2.bf16.msra.mxu0 0
      %2019 = vmatprep.subr.bf16.mxu0 0
      %2020 = vmatpush2.bf16.msra.mxu0 0
      %2021 = vmatprep.subr.bf16.mxu0 0
      %2022 = vmatpush2.bf16.msra.mxu0 0
      %2023 = vmatprep.subr.bf16.mxu0 0
      %2024 = vmatpush2.bf16.msra.mxu0 0
      %2025 = vmatprep.subr.bf16.mxu0 0
      %2026 = vmatpush2.bf16.msra.mxu0 0
      %2027 = vmatprep.subr.bf16.mxu0 0
      %2028 = vmatpush2.bf16.msra.mxu0 0
      %2029 = vmatprep.subr.bf16.mxu0 0
      %2030 = vmatpush2.bf16.msra.mxu0 0
      %2031 = vmatprep.subr.bf16.mxu0 0
      %2032 = vmatpush2.bf16.msra.mxu0 0
      %2033 = vmatprep.mubr.bf16.mxu0 0
      %2034 = vmatmul.mubr.bf16.gmra.mxu0 %v1890
      %v2035 = vpop.f32.mrf.mxu0
      %v2036 = vadd.f32 0.0, %v2035
      %v2037 = vpop.f32.mrf.mxu0
      %v2038 = vadd.f32 0.0, %v2037
      %v2039 = vpop.f32.mrf.mxu0
      %v2040 = vpop.f32.mrf.mxu0
      %2041 = vdwg.mxu0
      %2042 = vmatprep.subr.bf16.mxu0 0
      %2043 = vmatpush1.bf16.msra.mxu0 0
      %2044 = vmatprep.subr.bf16.mxu0 0
      %2045 = vmatpush1.bf16.msra.mxu0 0
      %2046 = vmatprep.subr.bf16.mxu0 0
      %2047 = vmatpush1.bf16.msra.mxu0 0
      %2048 = vmatprep.subr.bf16.mxu0 0
      %2049 = vmatpush1.bf16.msra.mxu0 0
      %2050 = vmatprep.subr.bf16.mxu0 0
      %2051 = vmatpush1.bf16.msra.mxu0 0
      %2052 = vmatprep.subr.bf16.mxu0 0
      %2053 = vmatpush1.bf16.msra.mxu0 0
      %2054 = vmatprep.subr.bf16.mxu0 0
      %2055 = vmatpush1.bf16.msra.mxu0 0
      %2056 = vmatprep.subr.bf16.mxu0 %v1914
      %2057 = vmatpush1.bf16.msra.mxu0 %v1911
      %2058 = vmatprep.subr.bf16.mxu0 0
      %2059 = vmatpush2.bf16.msra.mxu0 0
      %2060 = vmatprep.subr.bf16.mxu0 0
      %2061 = vmatpush2.bf16.msra.mxu0 0
      %2062 = vmatprep.subr.bf16.mxu0 0
      %2063 = vmatpush2.bf16.msra.mxu0 0
      %2064 = vmatprep.subr.bf16.mxu0 0
      %2065 = vmatpush2.bf16.msra.mxu0 0
      %2066 = vmatprep.subr.bf16.mxu0 0
      %2067 = vmatpush2.bf16.msra.mxu0 0
      %2068 = vmatprep.subr.bf16.mxu0 0
      %2069 = vmatpush2.bf16.msra.mxu0 0
      %2070 = vmatprep.subr.bf16.mxu0 0
      %2071 = vmatpush2.bf16.msra.mxu0 0
      %2072 = vmatprep.subr.bf16.mxu0 0
      %2073 = vmatpush2.bf16.msra.mxu0 0
      %2074 = vmatprep.mubr.bf16.mxu0 0
      %2075 = vmatmul.mubr.bf16.gmra.mxu0 %v1890
      %v2076 = vpop.f32.mrf.mxu0
      %v2077 = vadd.f32 0.0, %v2076
      %v2078 = vpop.f32.mrf.mxu0
      %v2079 = vadd.f32 0.0, %v2078
      %v2080 = vpop.f32.mrf.mxu0
      %v2081 = vpop.f32.mrf.mxu0
      %2082 = vdwg.mxu0
      %2083 = vmatprep.subr.bf16.mxu0 0
      %2084 = vmatpush1.bf16.msra.mxu0 0
      %2085 = vmatprep.subr.bf16.mxu0 0
      %2086 = vmatpush1.bf16.msra.mxu0 0
      %2087 = vmatprep.subr.bf16.mxu0 0
      %2088 = vmatpush1.bf16.msra.mxu0 0
      %2089 = vmatprep.subr.bf16.mxu0 0
      %2090 = vmatpush1.bf16.msra.mxu0 0
      %2091 = vmatprep.subr.bf16.mxu0 0
      %2092 = vmatpush1.bf16.msra.mxu0 0
      %2093 = vmatprep.subr.bf16.mxu0 0
      %2094 = vmatpush1.bf16.msra.mxu0 0
      %2095 = vmatprep.subr.bf16.mxu0 0
      %2096 = vmatpush1.bf16.msra.mxu0 0
      %2097 = vmatprep.subr.bf16.mxu0 0
      %2098 = vmatpush1.bf16.msra.mxu0 %v1917
      %2099 = vmatprep.subr.bf16.mxu0 0
      %2100 = vmatpush2.bf16.msra.mxu0 0
      %2101 = vmatprep.subr.bf16.mxu0 0
      %2102 = vmatpush2.bf16.msra.mxu0 0
      %2103 = vmatprep.subr.bf16.mxu0 0
      %2104 = vmatpush2.bf16.msra.mxu0 0
      %2105 = vmatprep.subr.bf16.mxu0 0
      %2106 = vmatpush2.bf16.msra.mxu0 0
      %2107 = vmatprep.subr.bf16.mxu0 0
      %2108 = vmatpush2.bf16.msra.mxu0 0
      %2109 = vmatprep.subr.bf16.mxu0 0
      %2110 = vmatpush2.bf16.msra.mxu0 0
      %2111 = vmatprep.subr.bf16.mxu0 0
      %2112 = vmatpush2.bf16.msra.mxu0 0
      %2113 = vmatprep.subr.bf16.mxu0 0
      %2114 = vmatpush2.bf16.msra.mxu0 0
      %2115 = vmatprep.mubr.bf16.mxu0 0
      %2116 = vmatmul.mubr.bf16.gmra.mxu0 %v1890
      %v2117 = vpop.f32.mrf.mxu0
      %v2118 = vadd.f32 0.0, %v2117
      %v2119 = vpop.f32.mrf.mxu0
      %v2120 = vpop.f32.mrf.mxu0
      %v2121 = vpop.f32.mrf.mxu0
      %2122 = vdwg.mxu0
      %v2123 = vadd.f32 %v1850, %v1954
      %v2124 = vadd.f32 %v1851, %v1956
      %v2125 = vadd.f32 %v1852, %v1995
      %v2126 = vadd.f32 %v1853, %v1997
      %v2127 = vadd.f32 %v1854, %v2036
      %v2128 = vadd.f32 %v1855, %v2038
      %v2129 = vadd.f32 %v1856, %v2077
      %v2130 = vadd.f32 %v1857, %v2079
      %v2131 = vadd.f32 %v1858, %v2118
      %2132 = vrot.lane.b32.xlu0 %v232, 61
      %v2133 = vpop.permute.xlu0 %2132
      %2134 = vrot.lane.b32.xlu0 %v240, 61
      %v2135 = vpop.permute.xlu0 %2134
      %2136 = vrot.lane.b32.xlu0 %v239, 61
      %v2137 = vpop.permute.xlu0 %2136
      %2138 = vrot.lane.b32.xlu0 %v241, 61
      %v2139 = vpop.permute.xlu0 %2138
      %2140 = vrot.lane.b32.xlu0 %v249, 61
      %v2141 = vpop.permute.xlu0 %2140
      %2142 = vrot.lane.b32.xlu0 %v257, 61
      %v2143 = vpop.permute.xlu0 %2142
      %2144 = vrot.lane.b32.xlu0 %v256, 61
      %v2145 = vpop.permute.xlu0 %2144
      %2146 = vrot.lane.b32.xlu0 %v258, 61
      %v2147 = vpop.permute.xlu0 %2146
      %2148 = vrot.lane.b32.xlu0 %v265, 61
      %v2149 = vpop.permute.xlu0 %2148
      %2150 = vrot.lane.b32.xlu0 %v266, 61
      %v2151 = vpop.permute.xlu0 %2150
      %vm2152 = vcmask 498688
      %v2153 = vsel %vm2152, %v2133, %v2135
      %v2154 = vsel %vm2152, %v2135, %v2137
      %v2155 = vsel %vm2152, %v2137, %v2139
      %v2156 = vsel %vm2152, %v2139, %v2141
      %v2157 = vsel %vm2152, %v2141, %v2143
      %v2158 = vsel %vm2152, %v2143, %v2145
      %v2159 = vsel %vm2152, %v2145, %v2147
      %v2160 = vsel %vm2152, %v2147, %v2149
      %v2161 = vsel %vm2152, %v2149, %v2151
      %v2163 = vsel %vm297, %v215, 0
      %v2166 = vsel %vm301, %v2153, 0
      %v2169 = vsel %vm301, %v2154, 0
      %v2172 = vsel %vm301, %v2155, 0
      %v2175 = vsel %vm301, %v2156, 0
      %v2178 = vsel %vm301, %v2157, 0
      %v2181 = vsel %vm301, %v2158, 0
      %v2184 = vsel %vm301, %v2159, 0
      %v2187 = vsel %vm301, %v2160, 0
      %v2190 = vsel %vm301, %v2161, 0
      %2192 = vmatprep.subr.bf16.mxu0 0
      %2193 = vmatpush1.bf16.msra.mxu0 0
      %2194 = vmatprep.subr.bf16.mxu0 0
      %2195 = vmatpush1.bf16.msra.mxu0 0
      %2196 = vmatprep.subr.bf16.mxu0 0
      %2197 = vmatpush1.bf16.msra.mxu0 0
      %2198 = vmatprep.subr.bf16.mxu0 0
      %2199 = vmatpush1.bf16.msra.mxu0 0
      %2200 = vmatprep.subr.bf16.mxu0 0
      %2201 = vmatpush1.bf16.msra.mxu0 0
      %2202 = vmatprep.subr.bf16.mxu0 0
      %2203 = vmatpush1.bf16.msra.mxu0 0
      %2204 = vmatprep.subr.bf16.mxu0 0
      %2205 = vmatpush1.bf16.msra.mxu0 0
      %2206 = vmatprep.subr.bf16.mxu0 %v2169
      %2207 = vmatpush1.bf16.msra.mxu0 %v2166
      %2208 = vmatprep.subr.bf16.mxu0 0
      %2209 = vmatpush2.bf16.msra.mxu0 0
      %2210 = vmatprep.subr.bf16.mxu0 0
      %2211 = vmatpush2.bf16.msra.mxu0 0
      %2212 = vmatprep.subr.bf16.mxu0 0
      %2213 = vmatpush2.bf16.msra.mxu0 0
      %2214 = vmatprep.subr.bf16.mxu0 0
      %2215 = vmatpush2.bf16.msra.mxu0 0
      %2216 = vmatprep.subr.bf16.mxu0 0
      %2217 = vmatpush2.bf16.msra.mxu0 0
      %2218 = vmatprep.subr.bf16.mxu0 0
      %2219 = vmatpush2.bf16.msra.mxu0 0
      %2220 = vmatprep.subr.bf16.mxu0 0
      %2221 = vmatpush2.bf16.msra.mxu0 0
      %2222 = vmatprep.subr.bf16.mxu0 0
      %2223 = vmatpush2.bf16.msra.mxu0 0
      %2224 = vmatprep.mubr.bf16.mxu0 0
      %2225 = vmatmul.mubr.bf16.gmra.mxu0 %v2163
      %v2226 = vpop.f32.mrf.mxu0
      %v2227 = vadd.f32 0.0, %v2226
      %v2228 = vpop.f32.mrf.mxu0
      %v2229 = vadd.f32 0.0, %v2228
      %v2230 = vpop.f32.mrf.mxu0
      %v2231 = vpop.f32.mrf.mxu0
      %2232 = vdwg.mxu0
      %2233 = vmatprep.subr.bf16.mxu0 0
      %2234 = vmatpush1.bf16.msra.mxu0 0
      %2235 = vmatprep.subr.bf16.mxu0 0
      %2236 = vmatpush1.bf16.msra.mxu0 0
      %2237 = vmatprep.subr.bf16.mxu0 0
      %2238 = vmatpush1.bf16.msra.mxu0 0
      %2239 = vmatprep.subr.bf16.mxu0 0
      %2240 = vmatpush1.bf16.msra.mxu0 0
      %2241 = vmatprep.subr.bf16.mxu0 0
      %2242 = vmatpush1.bf16.msra.mxu0 0
      %2243 = vmatprep.subr.bf16.mxu0 0
      %2244 = vmatpush1.bf16.msra.mxu0 0
      %2245 = vmatprep.subr.bf16.mxu0 0
      %2246 = vmatpush1.bf16.msra.mxu0 0
      %2247 = vmatprep.subr.bf16.mxu0 %v2175
      %2248 = vmatpush1.bf16.msra.mxu0 %v2172
      %2249 = vmatprep.subr.bf16.mxu0 0
      %2250 = vmatpush2.bf16.msra.mxu0 0
      %2251 = vmatprep.subr.bf16.mxu0 0
      %2252 = vmatpush2.bf16.msra.mxu0 0
      %2253 = vmatprep.subr.bf16.mxu0 0
      %2254 = vmatpush2.bf16.msra.mxu0 0
      %2255 = vmatprep.subr.bf16.mxu0 0
      %2256 = vmatpush2.bf16.msra.mxu0 0
      %2257 = vmatprep.subr.bf16.mxu0 0
      %2258 = vmatpush2.bf16.msra.mxu0 0
      %2259 = vmatprep.subr.bf16.mxu0 0
      %2260 = vmatpush2.bf16.msra.mxu0 0
      %2261 = vmatprep.subr.bf16.mxu0 0
      %2262 = vmatpush2.bf16.msra.mxu0 0
      %2263 = vmatprep.subr.bf16.mxu0 0
      %2264 = vmatpush2.bf16.msra.mxu0 0
      %2265 = vmatprep.mubr.bf16.mxu0 0
      %2266 = vmatmul.mubr.bf16.gmra.mxu0 %v2163
      %v2267 = vpop.f32.mrf.mxu0
      %v2268 = vadd.f32 0.0, %v2267
      %v2269 = vpop.f32.mrf.mxu0
      %v2270 = vadd.f32 0.0, %v2269
      %v2271 = vpop.f32.mrf.mxu0
      %v2272 = vpop.f32.mrf.mxu0
      %2273 = vdwg.mxu0
      %2274 = vmatprep.subr.bf16.mxu0 0
      %2275 = vmatpush1.bf16.msra.mxu0 0
      %2276 = vmatprep.subr.bf16.mxu0 0
      %2277 = vmatpush1.bf16.msra.mxu0 0
      %2278 = vmatprep.subr.bf16.mxu0 0
      %2279 = vmatpush1.bf16.msra.mxu0 0
      %2280 = vmatprep.subr.bf16.mxu0 0
      %2281 = vmatpush1.bf16.msra.mxu0 0
      %2282 = vmatprep.subr.bf16.mxu0 0
      %2283 = vmatpush1.bf16.msra.mxu0 0
      %2284 = vmatprep.subr.bf16.mxu0 0
      %2285 = vmatpush1.bf16.msra.mxu0 0
      %2286 = vmatprep.subr.bf16.mxu0 0
      %2287 = vmatpush1.bf16.msra.mxu0 0
      %2288 = vmatprep.subr.bf16.mxu0 %v2181
      %2289 = vmatpush1.bf16.msra.mxu0 %v2178
      %2290 = vmatprep.subr.bf16.mxu0 0
      %2291 = vmatpush2.bf16.msra.mxu0 0
      %2292 = vmatprep.subr.bf16.mxu0 0
      %2293 = vmatpush2.bf16.msra.mxu0 0
      %2294 = vmatprep.subr.bf16.mxu0 0
      %2295 = vmatpush2.bf16.msra.mxu0 0
      %2296 = vmatprep.subr.bf16.mxu0 0
      %2297 = vmatpush2.bf16.msra.mxu0 0
      %2298 = vmatprep.subr.bf16.mxu0 0
      %2299 = vmatpush2.bf16.msra.mxu0 0
      %2300 = vmatprep.subr.bf16.mxu0 0
      %2301 = vmatpush2.bf16.msra.mxu0 0
      %2302 = vmatprep.subr.bf16.mxu0 0
      %2303 = vmatpush2.bf16.msra.mxu0 0
      %2304 = vmatprep.subr.bf16.mxu0 0
      %2305 = vmatpush2.bf16.msra.mxu0 0
      %2306 = vmatprep.mubr.bf16.mxu0 0
      %2307 = vmatmul.mubr.bf16.gmra.mxu0 %v2163
      %v2308 = vpop.f32.mrf.mxu0
      %v2309 = vadd.f32 0.0, %v2308
      %v2310 = vpop.f32.mrf.mxu0
      %v2311 = vadd.f32 0.0, %v2310
      %v2312 = vpop.f32.mrf.mxu0
      %v2313 = vpop.f32.mrf.mxu0
      %2314 = vdwg.mxu0
      %2315 = vmatprep.subr.bf16.mxu0 0
      %2316 = vmatpush1.bf16.msra.mxu0 0
      %2317 = vmatprep.subr.bf16.mxu0 0
      %2318 = vmatpush1.bf16.msra.mxu0 0
      %2319 = vmatprep.subr.bf16.mxu0 0
      %2320 = vmatpush1.bf16.msra.mxu0 0
      %2321 = vmatprep.subr.bf16.mxu0 0
      %2322 = vmatpush1.bf16.msra.mxu0 0
      %2323 = vmatprep.subr.bf16.mxu0 0
      %2324 = vmatpush1.bf16.msra.mxu0 0
      %2325 = vmatprep.subr.bf16.mxu0 0
      %2326 = vmatpush1.bf16.msra.mxu0 0
      %2327 = vmatprep.subr.bf16.mxu0 0
      %2328 = vmatpush1.bf16.msra.mxu0 0
      %2329 = vmatprep.subr.bf16.mxu0 %v2187
      %2330 = vmatpush1.bf16.msra.mxu0 %v2184
      %2331 = vmatprep.subr.bf16.mxu0 0
      %2332 = vmatpush2.bf16.msra.mxu0 0
      %2333 = vmatprep.subr.bf16.mxu0 0
      %2334 = vmatpush2.bf16.msra.mxu0 0
      %2335 = vmatprep.subr.bf16.mxu0 0
      %2336 = vmatpush2.bf16.msra.mxu0 0
      %2337 = vmatprep.subr.bf16.mxu0 0
      %2338 = vmatpush2.bf16.msra.mxu0 0
      %2339 = vmatprep.subr.bf16.mxu0 0
      %2340 = vmatpush2.bf16.msra.mxu0 0
      %2341 = vmatprep.subr.bf16.mxu0 0
      %2342 = vmatpush2.bf16.msra.mxu0 0
      %2343 = vmatprep.subr.bf16.mxu0 0
      %2344 = vmatpush2.bf16.msra.mxu0 0
      %2345 = vmatprep.subr.bf16.mxu0 0
      %2346 = vmatpush2.bf16.msra.mxu0 0
      %2347 = vmatprep.mubr.bf16.mxu0 0
      %2348 = vmatmul.mubr.bf16.gmra.mxu0 %v2163
      %v2349 = vpop.f32.mrf.mxu0
      %v2350 = vadd.f32 0.0, %v2349
      %v2351 = vpop.f32.mrf.mxu0
      %v2352 = vadd.f32 0.0, %v2351
      %v2353 = vpop.f32.mrf.mxu0
      %v2354 = vpop.f32.mrf.mxu0
      %2355 = vdwg.mxu0
      %2356 = vmatprep.subr.bf16.mxu0 0
      %2357 = vmatpush1.bf16.msra.mxu0 0
      %2358 = vmatprep.subr.bf16.mxu0 0
      %2359 = vmatpush1.bf16.msra.mxu0 0
      %2360 = vmatprep.subr.bf16.mxu0 0
      %2361 = vmatpush1.bf16.msra.mxu0 0
      %2362 = vmatprep.subr.bf16.mxu0 0
      %2363 = vmatpush1.bf16.msra.mxu0 0
      %2364 = vmatprep.subr.bf16.mxu0 0
      %2365 = vmatpush1.bf16.msra.mxu0 0
      %2366 = vmatprep.subr.bf16.mxu0 0
      %2367 = vmatpush1.bf16.msra.mxu0 0
      %2368 = vmatprep.subr.bf16.mxu0 0
      %2369 = vmatpush1.bf16.msra.mxu0 0
      %2370 = vmatprep.subr.bf16.mxu0 0
      %2371 = vmatpush1.bf16.msra.mxu0 %v2190
      %2372 = vmatprep.subr.bf16.mxu0 0
      %2373 = vmatpush2.bf16.msra.mxu0 0
      %2374 = vmatprep.subr.bf16.mxu0 0
      %2375 = vmatpush2.bf16.msra.mxu0 0
      %2376 = vmatprep.subr.bf16.mxu0 0
      %2377 = vmatpush2.bf16.msra.mxu0 0
      %2378 = vmatprep.subr.bf16.mxu0 0
      %2379 = vmatpush2.bf16.msra.mxu0 0
      %2380 = vmatprep.subr.bf16.mxu0 0
      %2381 = vmatpush2.bf16.msra.mxu0 0
      %2382 = vmatprep.subr.bf16.mxu0 0
      %2383 = vmatpush2.bf16.msra.mxu0 0
      %2384 = vmatprep.subr.bf16.mxu0 0
      %2385 = vmatpush2.bf16.msra.mxu0 0
      %2386 = vmatprep.subr.bf16.mxu0 0
      %2387 = vmatpush2.bf16.msra.mxu0 0
      %2388 = vmatprep.mubr.bf16.mxu0 0
      %2389 = vmatmul.mubr.bf16.gmra.mxu0 %v2163
      %v2390 = vpop.f32.mrf.mxu0
      %v2391 = vadd.f32 0.0, %v2390
      %v2392 = vpop.f32.mrf.mxu0
      %v2393 = vpop.f32.mrf.mxu0
      %v2394 = vpop.f32.mrf.mxu0
      %2395 = vdwg.mxu0
      %v2396 = vadd.f32 %v2123, %v2227
      %v2397 = vadd.f32 %v2124, %v2229
      %v2398 = vadd.f32 %v2125, %v2268
      %v2399 = vadd.f32 %v2126, %v2270
      %v2400 = vadd.f32 %v2127, %v2309
      %v2401 = vadd.f32 %v2128, %v2311
      %v2402 = vadd.f32 %v2129, %v2350
      %v2403 = vadd.f32 %v2130, %v2352
      %v2404 = vadd.f32 %v2131, %v2391
      %2405 = vrot.lane.b32.xlu0 %v232, 60
      %v2406 = vpop.permute.xlu0 %2405
      %2407 = vrot.lane.b32.xlu0 %v240, 60
      %v2408 = vpop.permute.xlu0 %2407
      %2409 = vrot.lane.b32.xlu0 %v239, 60
      %v2410 = vpop.permute.xlu0 %2409
      %2411 = vrot.lane.b32.xlu0 %v241, 60
      %v2412 = vpop.permute.xlu0 %2411
      %2413 = vrot.lane.b32.xlu0 %v249, 60
      %v2414 = vpop.permute.xlu0 %2413
      %2415 = vrot.lane.b32.xlu0 %v257, 60
      %v2416 = vpop.permute.xlu0 %2415
      %2417 = vrot.lane.b32.xlu0 %v256, 60
      %v2418 = vpop.permute.xlu0 %2417
      %2419 = vrot.lane.b32.xlu0 %v258, 60
      %v2420 = vpop.permute.xlu0 %2419
      %2421 = vrot.lane.b32.xlu0 %v265, 60
      %v2422 = vpop.permute.xlu0 %2421
      %2423 = vrot.lane.b32.xlu0 %v266, 60
      %v2424 = vpop.permute.xlu0 %2423
      %vm2425 = vcmask 490496
      %v2426 = vsel %vm2425, %v2406, %v2408
      %v2427 = vsel %vm2425, %v2408, %v2410
      %v2428 = vsel %vm2425, %v2410, %v2412
      %v2429 = vsel %vm2425, %v2412, %v2414
      %v2430 = vsel %vm2425, %v2414, %v2416
      %v2431 = vsel %vm2425, %v2416, %v2418
      %v2432 = vsel %vm2425, %v2418, %v2420
      %v2433 = vsel %vm2425, %v2420, %v2422
      %v2434 = vsel %vm2425, %v2422, %v2424
      %v2436 = vsel %vm297, %v216, 0
      %v2439 = vsel %vm301, %v2426, 0
      %v2442 = vsel %vm301, %v2427, 0
      %v2445 = vsel %vm301, %v2428, 0
      %v2448 = vsel %vm301, %v2429, 0
      %v2451 = vsel %vm301, %v2430, 0
      %v2454 = vsel %vm301, %v2431, 0
      %v2457 = vsel %vm301, %v2432, 0
      %v2460 = vsel %vm301, %v2433, 0
      %v2463 = vsel %vm301, %v2434, 0
      %2465 = vmatprep.subr.bf16.mxu0 0
      %2466 = vmatpush1.bf16.msra.mxu0 0
      %2467 = vmatprep.subr.bf16.mxu0 0
      %2468 = vmatpush1.bf16.msra.mxu0 0
      %2469 = vmatprep.subr.bf16.mxu0 0
      %2470 = vmatpush1.bf16.msra.mxu0 0
      %2471 = vmatprep.subr.bf16.mxu0 0
      %2472 = vmatpush1.bf16.msra.mxu0 0
      %2473 = vmatprep.subr.bf16.mxu0 0
      %2474 = vmatpush1.bf16.msra.mxu0 0
      %2475 = vmatprep.subr.bf16.mxu0 0
      %2476 = vmatpush1.bf16.msra.mxu0 0
      %2477 = vmatprep.subr.bf16.mxu0 0
      %2478 = vmatpush1.bf16.msra.mxu0 0
      %2479 = vmatprep.subr.bf16.mxu0 %v2442
      %2480 = vmatpush1.bf16.msra.mxu0 %v2439
      %2481 = vmatprep.subr.bf16.mxu0 0
      %2482 = vmatpush2.bf16.msra.mxu0 0
      %2483 = vmatprep.subr.bf16.mxu0 0
      %2484 = vmatpush2.bf16.msra.mxu0 0
      %2485 = vmatprep.subr.bf16.mxu0 0
      %2486 = vmatpush2.bf16.msra.mxu0 0
      %2487 = vmatprep.subr.bf16.mxu0 0
      %2488 = vmatpush2.bf16.msra.mxu0 0
      %2489 = vmatprep.subr.bf16.mxu0 0
      %2490 = vmatpush2.bf16.msra.mxu0 0
      %2491 = vmatprep.subr.bf16.mxu0 0
      %2492 = vmatpush2.bf16.msra.mxu0 0
      %2493 = vmatprep.subr.bf16.mxu0 0
      %2494 = vmatpush2.bf16.msra.mxu0 0
      %2495 = vmatprep.subr.bf16.mxu0 0
      %2496 = vmatpush2.bf16.msra.mxu0 0
      %2497 = vmatprep.mubr.bf16.mxu0 0
      %2498 = vmatmul.mubr.bf16.gmra.mxu0 %v2436
      %v2499 = vpop.f32.mrf.mxu0
      %v2500 = vadd.f32 0.0, %v2499
      %v2501 = vpop.f32.mrf.mxu0
      %v2502 = vadd.f32 0.0, %v2501
      %v2503 = vpop.f32.mrf.mxu0
      %v2504 = vpop.f32.mrf.mxu0
      %2505 = vdwg.mxu0
      %2506 = vmatprep.subr.bf16.mxu0 0
      %2507 = vmatpush1.bf16.msra.mxu0 0
      %2508 = vmatprep.subr.bf16.mxu0 0
      %2509 = vmatpush1.bf16.msra.mxu0 0
      %2510 = vmatprep.subr.bf16.mxu0 0
      %2511 = vmatpush1.bf16.msra.mxu0 0
      %2512 = vmatprep.subr.bf16.mxu0 0
      %2513 = vmatpush1.bf16.msra.mxu0 0
      %2514 = vmatprep.subr.bf16.mxu0 0
      %2515 = vmatpush1.bf16.msra.mxu0 0
      %2516 = vmatprep.subr.bf16.mxu0 0
      %2517 = vmatpush1.bf16.msra.mxu0 0
      %2518 = vmatprep.subr.bf16.mxu0 0
      %2519 = vmatpush1.bf16.msra.mxu0 0
      %2520 = vmatprep.subr.bf16.mxu0 %v2448
      %2521 = vmatpush1.bf16.msra.mxu0 %v2445
      %2522 = vmatprep.subr.bf16.mxu0 0
      %2523 = vmatpush2.bf16.msra.mxu0 0
      %2524 = vmatprep.subr.bf16.mxu0 0
      %2525 = vmatpush2.bf16.msra.mxu0 0
      %2526 = vmatprep.subr.bf16.mxu0 0
      %2527 = vmatpush2.bf16.msra.mxu0 0
      %2528 = vmatprep.subr.bf16.mxu0 0
      %2529 = vmatpush2.bf16.msra.mxu0 0
      %2530 = vmatprep.subr.bf16.mxu0 0
      %2531 = vmatpush2.bf16.msra.mxu0 0
      %2532 = vmatprep.subr.bf16.mxu0 0
      %2533 = vmatpush2.bf16.msra.mxu0 0
      %2534 = vmatprep.subr.bf16.mxu0 0
      %2535 = vmatpush2.bf16.msra.mxu0 0
      %2536 = vmatprep.subr.bf16.mxu0 0
      %2537 = vmatpush2.bf16.msra.mxu0 0
      %2538 = vmatprep.mubr.bf16.mxu0 0
      %2539 = vmatmul.mubr.bf16.gmra.mxu0 %v2436
      %v2540 = vpop.f32.mrf.mxu0
      %v2541 = vadd.f32 0.0, %v2540
      %v2542 = vpop.f32.mrf.mxu0
      %v2543 = vadd.f32 0.0, %v2542
      %v2544 = vpop.f32.mrf.mxu0
      %v2545 = vpop.f32.mrf.mxu0
      %2546 = vdwg.mxu0
      %2547 = vmatprep.subr.bf16.mxu0 0
      %2548 = vmatpush1.bf16.msra.mxu0 0
      %2549 = vmatprep.subr.bf16.mxu0 0
      %2550 = vmatpush1.bf16.msra.mxu0 0
      %2551 = vmatprep.subr.bf16.mxu0 0
      %2552 = vmatpush1.bf16.msra.mxu0 0
      %2553 = vmatprep.subr.bf16.mxu0 0
      %2554 = vmatpush1.bf16.msra.mxu0 0
      %2555 = vmatprep.subr.bf16.mxu0 0
      %2556 = vmatpush1.bf16.msra.mxu0 0
      %2557 = vmatprep.subr.bf16.mxu0 0
      %2558 = vmatpush1.bf16.msra.mxu0 0
      %2559 = vmatprep.subr.bf16.mxu0 0
      %2560 = vmatpush1.bf16.msra.mxu0 0
      %2561 = vmatprep.subr.bf16.mxu0 %v2454
      %2562 = vmatpush1.bf16.msra.mxu0 %v2451
      %2563 = vmatprep.subr.bf16.mxu0 0
      %2564 = vmatpush2.bf16.msra.mxu0 0
      %2565 = vmatprep.subr.bf16.mxu0 0
      %2566 = vmatpush2.bf16.msra.mxu0 0
      %2567 = vmatprep.subr.bf16.mxu0 0
      %2568 = vmatpush2.bf16.msra.mxu0 0
      %2569 = vmatprep.subr.bf16.mxu0 0
      %2570 = vmatpush2.bf16.msra.mxu0 0
      %2571 = vmatprep.subr.bf16.mxu0 0
      %2572 = vmatpush2.bf16.msra.mxu0 0
      %2573 = vmatprep.subr.bf16.mxu0 0
      %2574 = vmatpush2.bf16.msra.mxu0 0
      %2575 = vmatprep.subr.bf16.mxu0 0
      %2576 = vmatpush2.bf16.msra.mxu0 0
      %2577 = vmatprep.subr.bf16.mxu0 0
      %2578 = vmatpush2.bf16.msra.mxu0 0
      %2579 = vmatprep.mubr.bf16.mxu0 0
      %2580 = vmatmul.mubr.bf16.gmra.mxu0 %v2436
      %v2581 = vpop.f32.mrf.mxu0
      %v2582 = vadd.f32 0.0, %v2581
      %v2583 = vpop.f32.mrf.mxu0
      %v2584 = vadd.f32 0.0, %v2583
      %v2585 = vpop.f32.mrf.mxu0
      %v2586 = vpop.f32.mrf.mxu0
      %2587 = vdwg.mxu0
      %2588 = vmatprep.subr.bf16.mxu0 0
      %2589 = vmatpush1.bf16.msra.mxu0 0
      %2590 = vmatprep.subr.bf16.mxu0 0
      %2591 = vmatpush1.bf16.msra.mxu0 0
      %2592 = vmatprep.subr.bf16.mxu0 0
      %2593 = vmatpush1.bf16.msra.mxu0 0
      %2594 = vmatprep.subr.bf16.mxu0 0
      %2595 = vmatpush1.bf16.msra.mxu0 0
      %2596 = vmatprep.subr.bf16.mxu0 0
      %2597 = vmatpush1.bf16.msra.mxu0 0
      %2598 = vmatprep.subr.bf16.mxu0 0
      %2599 = vmatpush1.bf16.msra.mxu0 0
      %2600 = vmatprep.subr.bf16.mxu0 0
      %2601 = vmatpush1.bf16.msra.mxu0 0
      %2602 = vmatprep.subr.bf16.mxu0 %v2460
      %2603 = vmatpush1.bf16.msra.mxu0 %v2457
      %2604 = vmatprep.subr.bf16.mxu0 0
      %2605 = vmatpush2.bf16.msra.mxu0 0
      %2606 = vmatprep.subr.bf16.mxu0 0
      %2607 = vmatpush2.bf16.msra.mxu0 0
      %2608 = vmatprep.subr.bf16.mxu0 0
      %2609 = vmatpush2.bf16.msra.mxu0 0
      %2610 = vmatprep.subr.bf16.mxu0 0
      %2611 = vmatpush2.bf16.msra.mxu0 0
      %2612 = vmatprep.subr.bf16.mxu0 0
      %2613 = vmatpush2.bf16.msra.mxu0 0
      %2614 = vmatprep.subr.bf16.mxu0 0
      %2615 = vmatpush2.bf16.msra.mxu0 0
      %2616 = vmatprep.subr.bf16.mxu0 0
      %2617 = vmatpush2.bf16.msra.mxu0 0
      %2618 = vmatprep.subr.bf16.mxu0 0
      %2619 = vmatpush2.bf16.msra.mxu0 0
      %2620 = vmatprep.mubr.bf16.mxu0 0
      %2621 = vmatmul.mubr.bf16.gmra.mxu0 %v2436
      %v2622 = vpop.f32.mrf.mxu0
      %v2623 = vadd.f32 0.0, %v2622
      %v2624 = vpop.f32.mrf.mxu0
      %v2625 = vadd.f32 0.0, %v2624
      %v2626 = vpop.f32.mrf.mxu0
      %v2627 = vpop.f32.mrf.mxu0
      %2628 = vdwg.mxu0
      %2629 = vmatprep.subr.bf16.mxu0 0
      %2630 = vmatpush1.bf16.msra.mxu0 0
      %2631 = vmatprep.subr.bf16.mxu0 0
      %2632 = vmatpush1.bf16.msra.mxu0 0
      %2633 = vmatprep.subr.bf16.mxu0 0
      %2634 = vmatpush1.bf16.msra.mxu0 0
      %2635 = vmatprep.subr.bf16.mxu0 0
      %2636 = vmatpush1.bf16.msra.mxu0 0
      %2637 = vmatprep.subr.bf16.mxu0 0
      %2638 = vmatpush1.bf16.msra.mxu0 0
      %2639 = vmatprep.subr.bf16.mxu0 0
      %2640 = vmatpush1.bf16.msra.mxu0 0
      %2641 = vmatprep.subr.bf16.mxu0 0
      %2642 = vmatpush1.bf16.msra.mxu0 0
      %2643 = vmatprep.subr.bf16.mxu0 0
      %2644 = vmatpush1.bf16.msra.mxu0 %v2463
      %2645 = vmatprep.subr.bf16.mxu0 0
      %2646 = vmatpush2.bf16.msra.mxu0 0
      %2647 = vmatprep.subr.bf16.mxu0 0
      %2648 = vmatpush2.bf16.msra.mxu0 0
      %2649 = vmatprep.subr.bf16.mxu0 0
      %2650 = vmatpush2.bf16.msra.mxu0 0
      %2651 = vmatprep.subr.bf16.mxu0 0
      %2652 = vmatpush2.bf16.msra.mxu0 0
      %2653 = vmatprep.subr.bf16.mxu0 0
      %2654 = vmatpush2.bf16.msra.mxu0 0
      %2655 = vmatprep.subr.bf16.mxu0 0
      %2656 = vmatpush2.bf16.msra.mxu0 0
      %2657 = vmatprep.subr.bf16.mxu0 0
      %2658 = vmatpush2.bf16.msra.mxu0 0
      %2659 = vmatprep.subr.bf16.mxu0 0
      %2660 = vmatpush2.bf16.msra.mxu0 0
      %2661 = vmatprep.mubr.bf16.mxu0 0
      %2662 = vmatmul.mubr.bf16.gmra.mxu0 %v2436
      %v2663 = vpop.f32.mrf.mxu0
      %v2664 = vadd.f32 0.0, %v2663
      %v2665 = vpop.f32.mrf.mxu0
      %v2666 = vpop.f32.mrf.mxu0
      %v2667 = vpop.f32.mrf.mxu0
      %2668 = vdwg.mxu0
      %v2669 = vadd.f32 %v2396, %v2500
      %v2670 = vadd.f32 %v2397, %v2502
      %v2671 = vadd.f32 %v2398, %v2541
      %v2672 = vadd.f32 %v2399, %v2543
      %v2673 = vadd.f32 %v2400, %v2582
      %v2674 = vadd.f32 %v2401, %v2584
      %v2675 = vadd.f32 %v2402, %v2623
      %v2676 = vadd.f32 %v2403, %v2625
      %v2677 = vadd.f32 %v2404, %v2664
      %v2680 = vlaneseq
      %v2681 = vshrl.u32 %v2680, 7
      %v2682 = vsub.s32 0, %v2681
      %v2683 = vrot.slane %v217, %v2682
      %v2684 = vlaneseq
      %v2685 = vshrl.u32 %v2684, 7
      %v2686 = vsub.s32 1, %v2685
      %v2687 = vrot.slane %v217, %v2686
      %v2688 = vlaneseq
      %v2689 = vshrl.u32 %v2688, 7
      %v2690 = vsub.s32 2, %v2689
      %v2691 = vrot.slane %v217, %v2690
      %v2692 = vlaneseq
      %v2693 = vshrl.u32 %v2692, 7
      %v2694 = vsub.s32 3, %v2693
      %v2695 = vrot.slane %v217, %v2694
      %v2696 = vlaneseq
      %v2697 = vshrl.u32 %v2696, 7
      %v2698 = vsub.s32 4, %v2697
      %v2699 = vrot.slane %v217, %v2698
      %v2700 = vlaneseq
      %v2701 = vshrl.u32 %v2700, 7
      %v2702 = vsub.s32 5, %v2701
      %v2703 = vrot.slane %v217, %v2702
      %v2704 = vlaneseq
      %v2705 = vshrl.u32 %v2704, 7
      %v2706 = vsub.s32 6, %v2705
      %v2707 = vrot.slane %v217, %v2706
      %v2708 = vlaneseq
      %v2709 = vshrl.u32 %v2708, 7
      %v2710 = vsub.s32 7, %v2709
      %v2711 = vrot.slane %v217, %v2710
      %v2712 = vlaneseq
      %v2713 = vshrl.u32 %v2712, 7
      %v2714 = vsub.s32 0, %v2713
      %v2715 = vrot.slane %v218, %v2714
      %v2725 = vmul.f32 %v2669, %v2683
      %v2726 = vmul.f32 %v2670, %v2687
      %v2727 = vmul.f32 %v2671, %v2691
      %v2728 = vmul.f32 %v2672, %v2695
      %v2729 = vmul.f32 %v2673, %v2699
      %v2730 = vmul.f32 %v2674, %v2703
      %v2731 = vmul.f32 %v2675, %v2707
      %v2732 = vmul.f32 %v2676, %v2711
      %v2733 = vmul.f32 %v2677, %v2715
      %v2734 = vadd.f32 %v2725, %v2726
      %v2735 = vadd.f32 %v2734, %v2727
      %v2736 = vadd.f32 %v2735, %v2728
      %v2737 = vadd.f32 %v2736, %v2729
      %v2738 = vadd.f32 %v2737, %v2730
      %v2739 = vadd.f32 %v2738, %v2731
      %v2740 = vadd.f32 %v2739, %v2732
      %v2741 = vadd.f32 %v2740, %v2733
      %2742 = vadd.xlane.f32.xlu0 %v2741
      %v2743 = vpop.xlane.xlu0 %2742
      %v2744 = vmul.f32 %v2725, %v2669
      %v2745 = vmul.f32 %v2726, %v2670
      %v2746 = vmul.f32 %v2727, %v2671
      %v2747 = vmul.f32 %v2728, %v2672
      %v2748 = vmul.f32 %v2729, %v2673
      %v2749 = vmul.f32 %v2730, %v2674
      %v2750 = vmul.f32 %v2731, %v2675
      %v2751 = vmul.f32 %v2732, %v2676
      %v2752 = vmul.f32 %v2733, %v2677
      %v2753 = vadd.f32 %v2744, %v2745
      %v2754 = vadd.f32 %v2753, %v2746
      %v2755 = vadd.f32 %v2754, %v2747
      %v2756 = vadd.f32 %v2755, %v2748
      %v2757 = vadd.f32 %v2756, %v2749
      %v2758 = vadd.f32 %v2757, %v2750
      %v2759 = vadd.f32 %v2758, %v2751
      %v2760 = vadd.f32 %v2759, %v2752
      %2761 = vadd.xlane.f32.xlu0 %v2760
      %v2762 = vpop.xlane.xlu0 %2761
      %vm2763 = vcmask 7168
      %2764 = vst.msk [vmem:[%s202] sm:$0xff] %vm2763, %v2743
      %2765 = vst.msk [vmem:[%s206] sm:$0xff] %vm2763, %v2762
      %p2766 = scmp.lt.s32.totalorder %s16, 1
      %s2767 = scalar_select %p2766, %s16, 1
      %s2768 = smul.addr %s2767, 8
      %s2769 = scalar_lea.vmem %s3, %s2768
      %p2770 = scmp.lt.s32.totalorder %s16, 1
      %s2771 = scalar_select %p2770, %s16, 1
      %s2772 = smul.addr %s2771, 8
      %s2773 = scalar_lea.vmem %s4, %s2772
      // Predicated region
      $region33: #{tpu_custom_call.1} parent=31 // pred_check
        %p2774 = pneg %p102
      $region34: #{tpu_custom_call.1} parent=31 // pred_check_branch
        %2776 = sbr.rel (%p2774) target = $region36
      $region35: #{tpu_custom_call.1} parent=31 // pred_region
        _
      $region36: #{tpu_custom_call.1} parent=31 // pred_fallthru
        _
      // Predicated region
      $region37: #{tpu_custom_call.1} parent=31 // pred_check
        %p2777 = pneg %p128
      $region38: #{tpu_custom_call.1} parent=31 // pred_check_branch
        %2779 = sbr.rel (%p2777) target = $region40
      $region39: #{tpu_custom_call.1} parent=31 // pred_region
        _
      $region40: #{tpu_custom_call.1} parent=31 // pred_fallthru
        _
    $region32: #{tpu_custom_call.1} parent=5 // pred_fallthru
      _
    %p2780 = scmp.le.s32.totalorder 2, %s11
    // Predicated region
    $region41: #{tpu_custom_call.1} parent=5 // pred_check
      %p2781 = pneg %p2780
    $region42: #{tpu_custom_call.1} parent=5 // pred_check_branch
      %2783 = sbr.rel (%p2781) target = $region44
    $region43: #{tpu_custom_call.1} parent=5 // pred_region
      %s2784 = ssub.s32 %s11, 2
      // Predicated region
      $region45: #{tpu_custom_call.1} parent=43 // pred_check
        %p2785 = pneg %p108
      $region46: #{tpu_custom_call.1} parent=43 // pred_check_branch
        %2787 = sbr.rel (%p2785) target = $region48
      $region47: #{tpu_custom_call.1} parent=43 // pred_region
        %p2788 = scmp.lt.s32.totalorder %s17, 1
        %s2789 = scalar_select %p2788, %s17, 1
        %s2790 = smul.addr %s2789, 8
        %s2791 = scalar_lea.vmem %s3, %s2790
      $region48: #{tpu_custom_call.1} parent=43 // pred_fallthru
        _
      // Predicated region
      $region49: #{tpu_custom_call.1} parent=43 // pred_check
        %p2792 = pneg %p134
      $region50: #{tpu_custom_call.1} parent=43 // pred_check_branch
        %2794 = sbr.rel (%p2792) target = $region52
      $region51: #{tpu_custom_call.1} parent=43 // pred_region
        %p2795 = scmp.lt.s32.totalorder %s17, 1
        %s2796 = scalar_select %p2795, %s17, 1
        %s2797 = smul.addr %s2796, 8
        %s2798 = scalar_lea.vmem %s4, %s2797
      $region52: #{tpu_custom_call.1} parent=43 // pred_fallthru
        _
    $region44: #{tpu_custom_call.1} parent=5 // pred_fallthru
      _
  $region6: #{tpu_custom_call.1} parent=0 // loop_footer
    %s15 = sadd.s32 1, %s11
  $region7: #{tpu_custom_call.1} parent=0 // loop_footer_branch
    %10 = sbr.rel target = $region3
  $region8: #{tpu_custom_call.1} parent=0 // loop_exit
    _

</llo_original>
